<compile_context>
chip_gen: v6e
topology: v6e:2x2x1
jax: 0.10.0
libtpu: 0.0.40
codegen_flags: <defaults>
</compile_context>

<pallas_src>
import functools
import math

import jax
import jax.numpy as jnp
from jax import lax
from jax.experimental import pallas as pl
from jax.experimental.pallas import tpu as pltpu


# ----------------------------------------------------------------------------
# Helpers
# ----------------------------------------------------------------------------
def _full_spec(shape):
    """Whole-array-in-VMEM BlockSpec for a grid of (1,)."""
    zeros = (0,) * len(shape)
    return pl.BlockSpec(shape, lambda i, _z=zeros: _z)


def _choose_tile(total, m, cap, align):
    """Largest divisor of `total` that is a multiple of lcm(align, m) and <= cap.

    Falls back to `total` itself (full-extent block, which always satisfies the
    TPU (8,128) block constraint).
    """
    base = align * m // math.gcd(align, m)
    best = None
    t = base
    while t <= min(cap, total):
        if total % t == 0:
            best = t
        t += base
    return best if best is not None else total


# ----------------------------------------------------------------------------
# Kernel 1: A matrix, Euler mean, and output covariance block M
#   V1 = diag(|diag(Z1)|) + e_par I                (diag_plus)  -> diagonal
#   V2 = tril(Z2,-1) + diag(|diag(Z2)|) + e_par I  (L_plus)
#   V3 = triu(Z3,1) - triu(Z3,1)^T                 (Skew)
#   P_inv = V1^{-T} V1^{-1} = diag(1/(|d1|+e)^2)   (row scaling, no matmul)
#   A = -0.5 P_inv (V2 V2^T) - e_stab I + P_inv V3
#   mean: Phi = I + dt*A ; x_{i+1} = x_i Phi^T + dt*(U B^T)_i ; mu = X C^T + U D^T
#   M    = C cov_x0 C^T + D D^T
# ----------------------------------------------------------------------------
def _segp_core_kernel(z1_ref, z2_ref, z3_ref,
                      b_ref, c_ref, d_ref,
                      mx0_ref, mu_u_ref, covx0_ref,
                      a_ref, mu_ref, mblk_ref,
                      x_hist_ref, ub_ref,
                      *, n, tmax, dt, e_par, e_stab):
    f32 = jnp.float32
    tb = (((1,), (1,)), ((), ()))          # contract dim1-dim1 == X @ W^T (no .T copy)

    row_n = lax.broadcasted_iota(jnp.int32, (n, n), 0)
    col_n = lax.broadcasted_iota(jnp.int32, (n, n), 1)
    eye_n = row_n == col_n
    eye_f = jnp.where(eye_n, 1.0, 0.0).astype(f32)

    z1 = z1_ref[...]
    z2 = z2_ref[...]
    z3 = z3_ref[...]

    # diag_plus(Z1) -> diagonal; P_inv is diagonal -> pure row scaling (VPU).
    d1 = jnp.sum(jnp.where(eye_n, z1, 0.0), axis=1, keepdims=True)        # (n,1)
    v1_diag = jnp.abs(d1) + e_par
    p_inv = 1.0 / (v1_diag * v1_diag)                                     # (n,1)

    # L_plus(Z2)
    d2 = jnp.sum(jnp.where(eye_n, z2, 0.0), axis=1, keepdims=True)
    v2 = jnp.where(row_n > col_n, z2, 0.0) + jnp.where(eye_n, jnp.abs(d2) + e_par, 0.0)

    # Skew(Z3)
    u3 = jnp.where(col_n > row_n, z3, 0.0)
    v3 = u3 - u3.T

    w = lax.dot_general(v2, v2, tb, preferred_element_type=f32)           # V2 V2^T (MXU)
    a = p_inv * (-0.5 * w + v3) - e_stab * eye_f
    a_ref[...] = a

    B = b_ref[...]
    C = c_ref[...]
    D = d_ref[...]

    # ---------------- mean: hoisted input projection + folded-dt recursion ---
    phi = eye_f + dt * a                                                  # (n,n)
    ub_ref[...] = dt * lax.dot_general(mu_u_ref[...], B, tb,
                                       preferred_element_type=f32)        # dt * U B^T

    def step(i, x):                                                       # x: (1, n)
        x_hist_ref[pl.ds(i, 1), :] = x
        # single dependent MXU op per step + one row add
        return (lax.dot_general(x, phi, tb, preferred_element_type=f32)
                + ub_ref[pl.ds(i, 1), :])

    lax.fori_loop(0, tmax, step, mx0_ref[...], unroll=min(8, tmax))

    X = x_hist_ref[...]                                                   # (tmax, n)
    U = mu_u_ref[...]                                                     # (tmax, p)
    # single block store of the whole mean (no per-step masked row stores)
    mu_ref[...] = (lax.dot_general(X, C, tb, preferred_element_type=f32)
                   + lax.dot_general(U, D, tb, preferred_element_type=f32))

    # ---------------- output block: M = C cov_x0 C^T + D D^T -----------------
    cc = jnp.dot(C, covx0_ref[...], preferred_element_type=f32)           # (m, n)
    mblk_ref[...] = (lax.dot_general(cc, C, tb, preferred_element_type=f32)
                     + lax.dot_general(D, D, tb, preferred_element_type=f32))


# ----------------------------------------------------------------------------
# Kernel 2: one (TI, TJ) tile of K = G(T,T) kron M, built by broadcast only.
#   t_col : (TI, 1) slice of the expanded time vector  t_big[a] = T[a // m]
#   t_row : (1, TJ) slice of the same vector (transposed view)
#   mpat  : (TI, TJ) grid-invariant tiling of M (mblk repeated with period m)
# ----------------------------------------------------------------------------
def _k_tile_kernel(t_col_ref, t_row_ref, mpat_ref, k_ref, *, inv_2lt2):
    diff = t_col_ref[...] - t_row_ref[...]                 # (TI,1)-(1,TJ) -> (TI,TJ)
    k_ref[...] = jnp.exp((-inv_2lt2) * (diff * diff)) * mpat_ref[...]


# ----------------------------------------------------------------------------
# Wrapper
# ----------------------------------------------------------------------------
def segp_forward(params, T, *, m, n, p, tmax, dt, lt, e_par=0.01, e_stab=0.1):
    """Two pallas_calls producing (mu, K, A)."""
    del p  # implied by params["B"].shape
    f32 = jnp.float32
    mt = m * tmax

    core = functools.partial(_segp_core_kernel, n=n, tmax=tmax, dt=float(dt),
                             e_par=float(e_par), e_stab=float(e_stab))

    pdims = {k: params[k].shape for k in params}
    A, mu2d, mblk = pl.pallas_call(
        core,
        grid=(1,),
        in_specs=[_full_spec(pdims["V1_raw"]), _full_spec(pdims["V2_raw"]),
                  _full_spec(pdims["V3_raw"]),
                  _full_spec(pdims["B"]), _full_spec(pdims["C"]), _full_spec(pdims["D"]),
                  _full_spec(pdims["mean_x0"]), _full_spec(pdims["mean_U"]),
                  _full_spec(pdims["cov_x0"])],
        out_specs=(_full_spec((n, n)), _full_spec((tmax, m)), _full_spec((m, m))),
        out_shape=(jax.ShapeDtypeStruct((n, n), f32),
                   jax.ShapeDtypeStruct((tmax, m), f32),
                   jax.ShapeDtypeStruct((m, m), f32)),
        scratch_shapes=[pltpu.VMEM((tmax, n), f32),    # x history
                        pltpu.VMEM((tmax, n), f32)],   # dt * U B^T
        compiler_params=pltpu.CompilerParams(
            dimension_semantics=("arbitrary",),
            vmem_limit_bytes=32 * 1024 * 1024),
    )(params["V1_raw"].astype(f32), params["V2_raw"].astype(f32),
      params["V3_raw"].astype(f32),
      params["B"].astype(f32), params["C"].astype(f32), params["D"].astype(f32),
      params["mean_x0"].astype(f32), params["mean_U"].astype(f32),
      params["cov_x0"].astype(f32))

    mu = mu2d.reshape(mt)          # time-major flatten: idx = t*m + channel

    # --- K: tiled 2-D grid, broadcast-only construction ----------------------
    # t_big[a] = T[a // m]; the channel pattern of M repeats with period m, so a
    # single grid-invariant (TI, TJ) pattern tile covers every output tile.
    t_big = jnp.repeat(T.astype(f32).reshape(tmax), m)            # (mt,)
    t_col = t_big.reshape(mt, 1)
    t_row = t_big.reshape(1, mt)

    ti = _choose_tile(mt, m, cap=256, align=8)     # sublane-aligned rows
    tj = _choose_tile(mt, m, cap=512, align=128)   # lane-dense stores
    mpat = jnp.tile(mblk, (ti // m, tj // m))      # (TI, TJ), tiny, DMA'd once

    k_kern = functools.partial(_k_tile_kernel, inv_2lt2=0.5 / float(lt * lt))
    K = pl.pallas_call(
        k_kern,
        grid=(mt // ti, mt // tj),
        in_specs=[pl.BlockSpec((ti, 1), lambda i, j: (i, 0)),
                  pl.BlockSpec((1, tj), lambda i, j: (0, j)),
                  pl.BlockSpec((ti, tj), lambda i, j: (0, 0))],
        out_specs=pl.BlockSpec((ti, tj), lambda i, j: (i, j)),
        out_shape=jax.ShapeDtypeStruct((mt, mt), f32),
        compiler_params=pltpu.CompilerParams(
            dimension_semantics=("parallel", "parallel"),
            vmem_limit_bytes=64 * 1024 * 1024),
    )(t_col, t_row, mpat)

    return mu, K, A


# ----------------------------------------------------------------------------
# Pure-JAX references (for correctness checks of the in-kernel math)
# ----------------------------------------------------------------------------
def _ref_A(z1, z2, z3, n, e_par=0.01, e_stab=0.1):
    I = jnp.eye(n, dtype=jnp.float32)
    v1 = jnp.diag(jnp.abs(jnp.diag(z1))) + e_par * I
    v2 = jnp.tril(z2, -1) + jnp.diag(jnp.abs(jnp.diag(z2))) + e_par * I
    u3 = jnp.triu(z3, 1)
    v3 = u3 - u3.T
    v1_inv = jnp.linalg.inv(v1)
    p_inv = v1_inv.T @ v1_inv
    a = -0.5 * p_inv @ (v2 @ v2.T) - e_stab * I
    return a + p_inv @ v3


def _ref_mu(mean_x0, mean_U, A, B, C, D, tmax, dt):
    x = mean_x0
    rows = []
    for i in range(tmax):
        u = mean_U[i:i + 1]
        rows.append(x @ C.T + u @ D.T)
        x = x + dt * (x @ A.T + u @ B.T)
    return jnp.concatenate(rows, 0).reshape(-1)


# ----------------------------------------------------------------------------
if __name__ == "__main__":
    m, n, p = 2, 4, 3        # output / state / input dims
    tmax = 8
    dt = 0.1                 # time[2]
    lt = 1.0                 # SE length scale

    key = jax.random.PRNGKey(0)
    ks = jax.random.split(key, 9)
    params = {
        "V1_raw": jax.random.normal(ks[0], (n, n), jnp.float32),
        "V2_raw": jax.random.normal(ks[1], (n, n), jnp.float32),
        "V3_raw": jax.random.normal(ks[2], (n, n), jnp.float32),
        "B": jax.random.normal(ks[3], (n, p), jnp.float32),
        "C": jax.random.normal(ks[4], (m, n), jnp.float32),
        "D": jax.random.normal(ks[5], (m, p), jnp.float32),
        "mean_x0": jax.random.normal(ks[6], (1, n), jnp.float32),
        "mean_U": jax.random.normal(ks[7], (tmax, p), jnp.float32),
    }
    Lc = jax.random.normal(ks[8], (n, n), jnp.float32)
    params["cov_x0"] = Lc @ Lc.T / n + 0.1 * jnp.eye(n, dtype=jnp.float32)

    T = (jnp.arange(tmax, dtype=jnp.float32) * dt).reshape(tmax, 1)

    mu, K, A = segp_forward(params, T, m=m, n=n, p=p, tmax=tmax, dt=dt, lt=lt)
    jax.block_until_ready((mu, K, A))

    # Correctness checks against pure-JAX references.
    A_ref = _ref_A(params["V1_raw"], params["V2_raw"], params["V3_raw"], n)
    assert jnp.allclose(A, A_ref, atol=1e-4, rtol=1e-4), "A mismatch"

    mu_ref = _ref_mu(params["mean_x0"], params["mean_U"], A_ref,
                     params["B"], params["C"], params["D"], tmax, dt)
    assert jnp.allclose(mu, mu_ref, atol=1e-4, rtol=1e-4), "mu mismatch"

    G_ref = jnp.exp(-0.5 * (T - T.T) ** 2 / (lt * lt))
    M_ref = (params["C"] @ params["cov_x0"] @ params["C"].T
             + params["D"] @ params["D"].T)
    K_ref = (G_ref[:, None, :, None] * M_ref[None, :, None, :]).reshape(m * tmax, m * tmax)
    assert jnp.allclose(K, K_ref, atol=1e-4, rtol=1e-4), "K mismatch"

    assert mu.shape == (m * tmax,) and K.shape == (m * tmax, m * tmax)
    print("KERNEL_OK")
</pallas_src>

<mosaic_0001>
module attributes {stable_mosaic.version = 11 : i64} {
  func.func @_segp_core_kernel(%arg0: i32, %arg1: memref<4x4xf32, #tpu.memory_space<vmem>>, %arg2: memref<4x4xf32, #tpu.memory_space<vmem>>, %arg3: memref<4x4xf32, #tpu.memory_space<vmem>>, %arg4: memref<4x3xf32, #tpu.memory_space<vmem>>, %arg5: memref<2x4xf32, #tpu.memory_space<vmem>>, %arg6: memref<2x3xf32, #tpu.memory_space<vmem>>, %arg7: memref<1x4xf32, #tpu.memory_space<vmem>>, %arg8: memref<8x3xf32, #tpu.memory_space<vmem>>, %arg9: memref<4x4xf32, #tpu.memory_space<vmem>>, %arg10: memref<4x4xf32, #tpu.memory_space<vmem>>, %arg11: memref<8x2xf32, #tpu.memory_space<vmem>>, %arg12: memref<2x2xf32, #tpu.memory_space<vmem>>, %arg13: memref<8x4xf32, #tpu.memory_space<vmem>>, %arg14: memref<8x4xf32, #tpu.memory_space<vmem>>) attributes {dimension_semantics = [#tpu.dimension_semantics<arbitrary>], iteration_bounds = array<i64: 1>, scalar_prefetch = 0 : i64, scratch_operands = 2 : i64, tpu.core_type = #tpu.core_type<tc>, window_params = [{pipeline_mode = #tpu.pipeline_mode<synchronous>, transform_indices = @transform_0, window_bounds = array<i64: 4, 4>}, {pipeline_mode = #tpu.pipeline_mode<synchronous>, transform_indices = @transform_1, window_bounds = array<i64: 4, 4>}, {pipeline_mode = #tpu.pipeline_mode<synchronous>, transform_indices = @transform_2, window_bounds = array<i64: 4, 4>}, {pipeline_mode = #tpu.pipeline_mode<synchronous>, transform_indices = @transform_3, window_bounds = array<i64: 4, 3>}, {pipeline_mode = #tpu.pipeline_mode<synchronous>, transform_indices = @transform_4, window_bounds = array<i64: 2, 4>}, {pipeline_mode = #tpu.pipeline_mode<synchronous>, transform_indices = @transform_5, window_bounds = array<i64: 2, 3>}, {pipeline_mode = #tpu.pipeline_mode<synchronous>, transform_indices = @transform_6, window_bounds = array<i64: 1, 4>}, {pipeline_mode = #tpu.pipeline_mode<synchronous>, transform_indices = @transform_7, window_bounds = array<i64: 8, 3>}, {pipeline_mode = #tpu.pipeline_mode<synchronous>, transform_indices = @transform_8, window_bounds = array<i64: 4, 4>}, {pipeline_mode = #tpu.pipeline_mode<synchronous>, transform_indices = @transform_9, window_bounds = array<i64: 4, 4>}, {pipeline_mode = #tpu.pipeline_mode<synchronous>, transform_indices = @transform_10, window_bounds = array<i64: 8, 2>}, {pipeline_mode = #tpu.pipeline_mode<synchronous>, transform_indices = @transform_11, window_bounds = array<i64: 2, 2>}]} {
    %0 = tpu.iota {dimensions = array<i32: 0>} : vector<4x4xi32>
    %1 = tpu.iota {dimensions = array<i32: 1>} : vector<4x4xi32>
    %2 = arith.cmpi eq, %0, %1 : vector<4x4xi32>
    %cst = arith.constant 1.000000e+00 : f32
    %cst_0 = arith.constant 0.000000e+00 : f32
    %3 = vector.broadcast %cst : f32 to vector<4x4xf32>
    %4 = vector.broadcast %cst_0 : f32 to vector<4x4xf32>
    %5 = arith.select %2, %3, %4 : vector<4x4xi1>, vector<4x4xf32>
    %c0 = arith.constant 0 : index
    %c0_1 = arith.constant 0 : index
    %6 = vector.load %arg1[%c0, %c0_1] : memref<4x4xf32, #tpu.memory_space<vmem>>, vector<4x4xf32>
    %c0_2 = arith.constant 0 : index
    %c0_3 = arith.constant 0 : index
    %7 = vector.load %arg2[%c0_2, %c0_3] : memref<4x4xf32, #tpu.memory_space<vmem>>, vector<4x4xf32>
    %c0_4 = arith.constant 0 : index
    %c0_5 = arith.constant 0 : index
    %8 = vector.load %arg3[%c0_4, %c0_5] : memref<4x4xf32, #tpu.memory_space<vmem>>, vector<4x4xf32>
    %cst_6 = arith.constant 0.000000e+00 : f32
    %9 = vector.broadcast %cst_6 : f32 to vector<4x4xf32>
    %10 = arith.select %2, %6, %9 : vector<4x4xi1>, vector<4x4xf32>
    %cst_7 = arith.constant dense<0.000000e+00> : vector<4xf32>
    %11 = vector.multi_reduction <add>, %10, %cst_7 [1] : vector<4x4xf32> to vector<4xf32>
    %12 = vector.shape_cast %11 : vector<4xf32> to vector<4x1xf32>
    %13 = math.absf %12 : vector<4x1xf32>
    %cst_8 = arith.constant 0.00999999977 : f32
    %14 = vector.broadcast %cst_8 : f32 to vector<4x1xf32>
    %15 = arith.addf %13, %14 : vector<4x1xf32>
    %16 = arith.mulf %15, %15 : vector<4x1xf32>
    %cst_9 = arith.constant 1.000000e+00 : f32
    %17 = vector.broadcast %cst_9 : f32 to vector<4x1xf32>
    %18 = arith.divf %17, %16 : vector<4x1xf32>
    %cst_10 = arith.constant 0.000000e+00 : f32
    %19 = vector.broadcast %cst_10 : f32 to vector<4x4xf32>
    %20 = arith.select %2, %7, %19 : vector<4x4xi1>, vector<4x4xf32>
    %cst_11 = arith.constant dense<0.000000e+00> : vector<4xf32>
    %21 = vector.multi_reduction <add>, %20, %cst_11 [1] : vector<4x4xf32> to vector<4xf32>
    %22 = vector.shape_cast %21 : vector<4xf32> to vector<4x1xf32>
    %23 = arith.cmpi sgt, %0, %1 : vector<4x4xi32>
    %cst_12 = arith.constant 0.000000e+00 : f32
    %24 = vector.broadcast %cst_12 : f32 to vector<4x4xf32>
    %25 = arith.select %23, %7, %24 : vector<4x4xi1>, vector<4x4xf32>
    %26 = math.absf %22 : vector<4x1xf32>
    %cst_13 = arith.constant 0.00999999977 : f32
    %27 = vector.broadcast %cst_13 : f32 to vector<4x1xf32>
    %28 = arith.addf %26, %27 : vector<4x1xf32>
    %cst_14 = arith.constant 0.000000e+00 : f32
    %29 = vector.shape_cast %28 : vector<4x1xf32> to vector<4x1xf32>
    %30 = vector.broadcast %29 : vector<4x1xf32> to vector<4x4xf32>
    %31 = vector.broadcast %cst_14 : f32 to vector<4x4xf32>
    %32 = arith.select %2, %30, %31 : vector<4x4xi1>, vector<4x4xf32>
    %33 = arith.addf %25, %32 : vector<4x4xf32>
    %34 = arith.cmpi sgt, %1, %0 : vector<4x4xi32>
    %cst_15 = arith.constant 0.000000e+00 : f32
    %35 = vector.broadcast %cst_15 : f32 to vector<4x4xf32>
    %36 = arith.select %34, %8, %35 : vector<4x4xi1>, vector<4x4xf32>
    %37 = tpu.transpose %36, [1, 0] : vector<4x4xf32> -> vector<4x4xf32>
    %38 = arith.subf %36, %37 : vector<4x4xf32>
    %cst_16 = arith.constant dense<0.000000e+00> : vector<4x4xf32>
    %39 = tpu.matmul %33, %33, %cst_16 {dimension_numbers = #tpu.dot_dimension_numbers<[1], [1], [0], [0], [0, 0, 1, 0], [], []>} : vector<4x4xf32>, vector<4x4xf32>, vector<4x4xf32> -> vector<4x4xf32>
    %cst_17 = arith.constant -5.000000e-01 : f32
    %40 = vector.broadcast %cst_17 : f32 to vector<4x4xf32>
    %41 = arith.mulf %40, %39 : vector<4x4xf32>
    %42 = arith.addf %41, %38 : vector<4x4xf32>
    %43 = vector.broadcast %18 : vector<4x1xf32> to vector<4x4xf32>
    %44 = arith.mulf %43, %42 : vector<4x4xf32>
    %cst_18 = arith.constant 1.000000e-01 : f32
    %45 = vector.broadcast %cst_18 : f32 to vector<4x4xf32>
    %46 = arith.mulf %45, %5 : vector<4x4xf32>
    %47 = arith.subf %44, %46 : vector<4x4xf32>
    %c0_19 = arith.constant 0 : index
    %c0_20 = arith.constant 0 : index
    %48 = vector.load %arg10[%c0_19, %c0_20] : memref<4x4xf32, #tpu.memory_space<vmem>>, vector<4x4xf32>
    tpu.vector_store %arg10[%c0_19, %c0_20], %47 {strides = array<i32>} : memref<4x4xf32, #tpu.memory_space<vmem>>, vector<4x4xf32>,
    %c0_21 = arith.constant 0 : index
    %c0_22 = arith.constant 0 : index
    %49 = vector.load %arg4[%c0_21, %c0_22] : memref<4x3xf32, #tpu.memory_space<vmem>>, vector<4x3xf32>
    %c0_23 = arith.constant 0 : index
    %c0_24 = arith.constant 0 : index
    %50 = vector.load %arg5[%c0_23, %c0_24] : memref<2x4xf32, #tpu.memory_space<vmem>>, vector<2x4xf32>
    %c0_25 = arith.constant 0 : index
    %c0_26 = arith.constant 0 : index
    %51 = vector.load %arg6[%c0_25, %c0_26] : memref<2x3xf32, #tpu.memory_space<vmem>>, vector<2x3xf32>
    %cst_27 = arith.constant 1.000000e-01 : f32
    %52 = vector.broadcast %cst_27 : f32 to vector<4x4xf32>
    %53 = arith.mulf %52, %47 : vector<4x4xf32>
    %54 = arith.addf %5, %53 : vector<4x4xf32>
    %c0_28 = arith.constant 0 : index
    %c0_29 = arith.constant 0 : index
    %55 = vector.load %arg8[%c0_28, %c0_29] : memref<8x3xf32, #tpu.memory_space<vmem>>, vector<8x3xf32>
    %cst_30 = arith.constant dense<0.000000e+00> : vector<8x4xf32>
    %56 = tpu.matmul %55, %49, %cst_30 {dimension_numbers = #tpu.dot_dimension_numbers<[1], [1], [0], [0], [0, 0, 1, 0], [], []>} : vector<8x3xf32>, vector<4x3xf32>, vector<8x4xf32> -> vector<8x4xf32>
    %cst_31 = arith.constant 1.000000e-01 : f32
    %57 = vector.broadcast %cst_31 : f32 to vector<8x4xf32>
    %58 = arith.mulf %57, %56 : vector<8x4xf32>
    %c0_32 = arith.constant 0 : index
    %c0_33 = arith.constant 0 : index
    %59 = vector.load %arg14[%c0_32, %c0_33] : memref<8x4xf32, #tpu.memory_space<vmem>>, vector<8x4xf32>
    tpu.vector_store %arg14[%c0_32, %c0_33], %58 {strides = array<i32>} : memref<8x4xf32, #tpu.memory_space<vmem>>, vector<8x4xf32>,
    %c0_34 = arith.constant 0 : index
    %c0_35 = arith.constant 0 : index
    %60 = vector.load %arg7[%c0_34, %c0_35] : memref<1x4xf32, #tpu.memory_space<vmem>>, vector<1x4xf32>
    %c0_i32 = arith.constant 0 : i32
    %61 = arith.index_cast %c0_i32 : i32 to index
    %c0_36 = arith.constant 0 : index
    %62 = vector.load %arg13[%61, %c0_36] : memref<8x4xf32, #tpu.memory_space<vmem>>, vector<1x4xf32>
    tpu.vector_store %arg13[%61, %c0_36], %60 {strides = array<i32>} : memref<8x4xf32, #tpu.memory_space<vmem>>, vector<1x4xf32>,
    %cst_37 = arith.constant dense<0.000000e+00> : vector<1x4xf32>
    %63 = tpu.matmul %60, %54, %cst_37 {dimension_numbers = #tpu.dot_dimension_numbers<[1], [1], [0], [0], [0, 0, 1, 0], [], []>} : vector<1x4xf32>, vector<4x4xf32>, vector<1x4xf32> -> vector<1x4xf32>
    %64 = arith.index_cast %c0_i32 : i32 to index
    %c0_38 = arith.constant 0 : index
    %65 = vector.load %arg14[%64, %c0_38] : memref<8x4xf32, #tpu.memory_space<vmem>>, vector<1x4xf32>
    %66 = arith.addf %63, %65 : vector<1x4xf32>
    %c1_i32 = arith.constant 1 : i32
    %67 = arith.index_cast %c1_i32 : i32 to index
    %c0_39 = arith.constant 0 : index
    %68 = vector.load %arg13[%67, %c0_39] : memref<8x4xf32, #tpu.memory_space<vmem>>, vector<1x4xf32>
    tpu.vector_store %arg13[%67, %c0_39], %66 {strides = array<i32>} : memref<8x4xf32, #tpu.memory_space<vmem>>, vector<1x4xf32>,
    %cst_40 = arith.constant dense<0.000000e+00> : vector<1x4xf32>
    %69 = tpu.matmul %66, %54, %cst_40 {dimension_numbers = #tpu.dot_dimension_numbers<[1], [1], [0], [0], [0, 0, 1, 0], [], []>} : vector<1x4xf32>, vector<4x4xf32>, vector<1x4xf32> -> vector<1x4xf32>
    %70 = arith.index_cast %c1_i32 : i32 to index
    %c0_41 = arith.constant 0 : index
    %71 = vector.load %arg14[%70, %c0_41] : memref<8x4xf32, #tpu.memory_space<vmem>>, vector<1x4xf32>
    %72 = arith.addf %69, %71 : vector<1x4xf32>
    %c2_i32 = arith.constant 2 : i32
    %73 = arith.index_cast %c2_i32 : i32 to index
    %c0_42 = arith.constant 0 : index
    %74 = vector.load %arg13[%73, %c0_42] : memref<8x4xf32, #tpu.memory_space<vmem>>, vector<1x4xf32>
    tpu.vector_store %arg13[%73, %c0_42], %72 {strides = array<i32>} : memref<8x4xf32, #tpu.memory_space<vmem>>, vector<1x4xf32>,
    %cst_43 = arith.constant dense<0.000000e+00> : vector<1x4xf32>
    %75 = tpu.matmul %72, %54, %cst_43 {dimension_numbers = #tpu.dot_dimension_numbers<[1], [1], [0], [0], [0, 0, 1, 0], [], []>} : vector<1x4xf32>, vector<4x4xf32>, vector<1x4xf32> -> vector<1x4xf32>
    %76 = arith.index_cast %c2_i32 : i32 to index
    %c0_44 = arith.constant 0 : index
    %77 = vector.load %arg14[%76, %c0_44] : memref<8x4xf32, #tpu.memory_space<vmem>>, vector<1x4xf32>
    %78 = arith.addf %75, %77 : vector<1x4xf32>
    %c3_i32 = arith.constant 3 : i32
    %79 = arith.index_cast %c3_i32 : i32 to index
    %c0_45 = arith.constant 0 : index
    %80 = vector.load %arg13[%79, %c0_45] : memref<8x4xf32, #tpu.memory_space<vmem>>, vector<1x4xf32>
    tpu.vector_store %arg13[%79, %c0_45], %78 {strides = array<i32>} : memref<8x4xf32, #tpu.memory_space<vmem>>, vector<1x4xf32>,
    %cst_46 = arith.constant dense<0.000000e+00> : vector<1x4xf32>
    %81 = tpu.matmul %78, %54, %cst_46 {dimension_numbers = #tpu.dot_dimension_numbers<[1], [1], [0], [0], [0, 0, 1, 0], [], []>} : vector<1x4xf32>, vector<4x4xf32>, vector<1x4xf32> -> vector<1x4xf32>
    %82 = arith.index_cast %c3_i32 : i32 to index
    %c0_47 = arith.constant 0 : index
    %83 = vector.load %arg14[%82, %c0_47] : memref<8x4xf32, #tpu.memory_space<vmem>>, vector<1x4xf32>
    %84 = arith.addf %81, %83 : vector<1x4xf32>
    %c4_i32 = arith.constant 4 : i32
    %85 = arith.index_cast %c4_i32 : i32 to index
    %c0_48 = arith.constant 0 : index
    %86 = vector.load %arg13[%85, %c0_48] : memref<8x4xf32, #tpu.memory_space<vmem>>, vector<1x4xf32>
    tpu.vector_store %arg13[%85, %c0_48], %84 {strides = array<i32>} : memref<8x4xf32, #tpu.memory_space<vmem>>, vector<1x4xf32>,
    %cst_49 = arith.constant dense<0.000000e+00> : vector<1x4xf32>
    %87 = tpu.matmul %84, %54, %cst_49 {dimension_numbers = #tpu.dot_dimension_numbers<[1], [1], [0], [0], [0, 0, 1, 0], [], []>} : vector<1x4xf32>, vector<4x4xf32>, vector<1x4xf32> -> vector<1x4xf32>
    %88 = arith.index_cast %c4_i32 : i32 to index
    %c0_50 = arith.constant 0 : index
    %89 = vector.load %arg14[%88, %c0_50] : memref<8x4xf32, #tpu.memory_space<vmem>>, vector<1x4xf32>
    %90 = arith.addf %87, %89 : vector<1x4xf32>
    %c5_i32 = arith.constant 5 : i32
    %91 = arith.index_cast %c5_i32 : i32 to index
    %c0_51 = arith.constant 0 : index
    %92 = vector.load %arg13[%91, %c0_51] : memref<8x4xf32, #tpu.memory_space<vmem>>, vector<1x4xf32>
    tpu.vector_store %arg13[%91, %c0_51], %90 {strides = array<i32>} : memref<8x4xf32, #tpu.memory_space<vmem>>, vector<1x4xf32>,
    %cst_52 = arith.constant dense<0.000000e+00> : vector<1x4xf32>
    %93 = tpu.matmul %90, %54, %cst_52 {dimension_numbers = #tpu.dot_dimension_numbers<[1], [1], [0], [0], [0, 0, 1, 0], [], []>} : vector<1x4xf32>, vector<4x4xf32>, vector<1x4xf32> -> vector<1x4xf32>
    %94 = arith.index_cast %c5_i32 : i32 to index
    %c0_53 = arith.constant 0 : index
    %95 = vector.load %arg14[%94, %c0_53] : memref<8x4xf32, #tpu.memory_space<vmem>>, vector<1x4xf32>
    %96 = arith.addf %93, %95 : vector<1x4xf32>
    %c6_i32 = arith.constant 6 : i32
    %97 = arith.index_cast %c6_i32 : i32 to index
    %c0_54 = arith.constant 0 : index
    %98 = vector.load %arg13[%97, %c0_54] : memref<8x4xf32, #tpu.memory_space<vmem>>, vector<1x4xf32>
    tpu.vector_store %arg13[%97, %c0_54], %96 {strides = array<i32>} : memref<8x4xf32, #tpu.memory_space<vmem>>, vector<1x4xf32>,
    %cst_55 = arith.constant dense<0.000000e+00> : vector<1x4xf32>
    %99 = tpu.matmul %96, %54, %cst_55 {dimension_numbers = #tpu.dot_dimension_numbers<[1], [1], [0], [0], [0, 0, 1, 0], [], []>} : vector<1x4xf32>, vector<4x4xf32>, vector<1x4xf32> -> vector<1x4xf32>
    %100 = arith.index_cast %c6_i32 : i32 to index
    %c0_56 = arith.constant 0 : index
    %101 = vector.load %arg14[%100, %c0_56] : memref<8x4xf32, #tpu.memory_space<vmem>>, vector<1x4xf32>
    %102 = arith.addf %99, %101 : vector<1x4xf32>
    %c7_i32 = arith.constant 7 : i32
    %103 = arith.index_cast %c7_i32 : i32 to index
    %c0_57 = arith.constant 0 : index
    %104 = vector.load %arg13[%103, %c0_57] : memref<8x4xf32, #tpu.memory_space<vmem>>, vector<1x4xf32>
    tpu.vector_store %arg13[%103, %c0_57], %102 {strides = array<i32>} : memref<8x4xf32, #tpu.memory_space<vmem>>, vector<1x4xf32>,
    %cst_58 = arith.constant dense<0.000000e+00> : vector<1x4xf32>
    %105 = tpu.matmul %102, %54, %cst_58 {dimension_numbers = #tpu.dot_dimension_numbers<[1], [1], [0], [0], [0, 0, 1, 0], [], []>} : vector<1x4xf32>, vector<4x4xf32>, vector<1x4xf32> -> vector<1x4xf32>
    %106 = arith.index_cast %c7_i32 : i32 to index
    %c0_59 = arith.constant 0 : index
    %107 = vector.load %arg14[%106, %c0_59] : memref<8x4xf32, #tpu.memory_space<vmem>>, vector<1x4xf32>
    %108 = arith.addf %105, %107 : vector<1x4xf32>
    %c8_i32 = arith.constant 8 : i32
    %c0_60 = arith.constant 0 : index
    %c0_61 = arith.constant 0 : index
    %109 = vector.load %arg13[%c0_60, %c0_61] : memref<8x4xf32, #tpu.memory_space<vmem>>, vector<8x4xf32>
    %c0_62 = arith.constant 0 : index
    %c0_63 = arith.constant 0 : index
    %110 = vector.load %arg8[%c0_62, %c0_63] : memref<8x3xf32, #tpu.memory_space<vmem>>, vector<8x3xf32>
    %cst_64 = arith.constant dense<0.000000e+00> : vector<8x2xf32>
    %111 = tpu.matmul %109, %50, %cst_64 {dimension_numbers = #tpu.dot_dimension_numbers<[1], [1], [0], [0], [0, 0, 1, 0], [], []>} : vector<8x4xf32>, vector<2x4xf32>, vector<8x2xf32> -> vector<8x2xf32>
    %cst_65 = arith.constant dense<0.000000e+00> : vector<8x2xf32>
    %112 = tpu.matmul %110, %51, %cst_65 {dimension_numbers = #tpu.dot_dimension_numbers<[1], [1], [0], [0], [0, 0, 1, 0], [], []>} : vector<8x3xf32>, vector<2x3xf32>, vector<8x2xf32> -> vector<8x2xf32>
    %113 = arith.addf %111, %112 : vector<8x2xf32>
    %c0_66 = arith.constant 0 : index
    %c0_67 = arith.constant 0 : index
    %114 = vector.load %arg11[%c0_66, %c0_67] : memref<8x2xf32, #tpu.memory_space<vmem>>, vector<8x2xf32>
    tpu.vector_store %arg11[%c0_66, %c0_67], %113 {strides = array<i32>} : memref<8x2xf32, #tpu.memory_space<vmem>>, vector<8x2xf32>,
    %c0_68 = arith.constant 0 : index
    %c0_69 = arith.constant 0 : index
    %115 = vector.load %arg9[%c0_68, %c0_69] : memref<4x4xf32, #tpu.memory_space<vmem>>, vector<4x4xf32>
    %cst_70 = arith.constant dense<0.000000e+00> : vector<2x4xf32>
    %116 = tpu.matmul %50, %115, %cst_70 {dimension_numbers = #tpu.dot_dimension_numbers<[1], [0], [0], [1], [0, 0, 1, 1], [], []>} : vector<2x4xf32>, vector<4x4xf32>, vector<2x4xf32> -> vector<2x4xf32>
    %cst_71 = arith.constant dense<0.000000e+00> : vector<2x2xf32>
    %117 = tpu.matmul %116, %50, %cst_71 {dimension_numbers = #tpu.dot_dimension_numbers<[1], [1], [0], [0], [0, 0, 1, 0], [], []>} : vector<2x4xf32>, vector<2x4xf32>, vector<2x2xf32> -> vector<2x2xf32>
    %cst_72 = arith.constant dense<0.000000e+00> : vector<2x2xf32>
    %118 = tpu.matmul %51, %51, %cst_72 {dimension_numbers = #tpu.dot_dimension_numbers<[1], [1], [0], [0], [0, 0, 1, 0], [], []>} : vector<2x3xf32>, vector<2x3xf32>, vector<2x2xf32> -> vector<2x2xf32>
    %119 = arith.addf %117, %118 : vector<2x2xf32>
    %c0_73 = arith.constant 0 : index
    %c0_74 = arith.constant 0 : index
    %120 = vector.load %arg12[%c0_73, %c0_74] : memref<2x2xf32, #tpu.memory_space<vmem>>, vector<2x2xf32>
    tpu.vector_store %arg12[%c0_73, %c0_74], %119 {strides = array<i32>} : memref<2x2xf32, #tpu.memory_space<vmem>>, vector<2x2xf32>,
    return
  }
  func.func @transform_0(%arg0: i32) -> (i32, i32) {
    %c0_i32 = arith.constant 0 : i32
    %c0_i32_0 = arith.constant 0 : i32
    %c0_i32_1 = arith.constant 0 : i32
    return %c0_i32, %c0_i32_0 : i32, i32
  }
  func.func @transform_1(%arg0: i32) -> (i32, i32) {
    %c0_i32 = arith.constant 0 : i32
    %c0_i32_0 = arith.constant 0 : i32
    %c0_i32_1 = arith.constant 0 : i32
    return %c0_i32, %c0_i32_0 : i32, i32
  }
  func.func @transform_2(%arg0: i32) -> (i32, i32) {
    %c0_i32 = arith.constant 0 : i32
    %c0_i32_0 = arith.constant 0 : i32
    %c0_i32_1 = arith.constant 0 : i32
    return %c0_i32, %c0_i32_0 : i32, i32
  }
  func.func @transform_3(%arg0: i32) -> (i32, i32) {
    %c0_i32 = arith.constant 0 : i32
    %c0_i32_0 = arith.constant 0 : i32
    %c0_i32_1 = arith.constant 0 : i32
    return %c0_i32, %c0_i32_0 : i32, i32
  }
  func.func @transform_4(%arg0: i32) -> (i32, i32) {
    %c0_i32 = arith.constant 0 : i32
    %c0_i32_0 = arith.constant 0 : i32
    %c0_i32_1 = arith.constant 0 : i32
    return %c0_i32, %c0_i32_0 : i32, i32
  }
  func.func @transform_5(%arg0: i32) -> (i32, i32) {
    %c0_i32 = arith.constant 0 : i32
    %c0_i32_0 = arith.constant 0 : i32
    %c0_i32_1 = arith.constant 0 : i32
    return %c0_i32, %c0_i32_0 : i32, i32
  }
  func.func @transform_6(%arg0: i32) -> (i32, i32) {
    %c0_i32 = arith.constant 0 : i32
    %c0_i32_0 = arith.constant 0 : i32
    %c0_i32_1 = arith.constant 0 : i32
    return %c0_i32, %c0_i32_0 : i32, i32
  }
  func.func @transform_7(%arg0: i32) -> (i32, i32) {
    %c0_i32 = arith.constant 0 : i32
    %c0_i32_0 = arith.constant 0 : i32
    %c0_i32_1 = arith.constant 0 : i32
    return %c0_i32, %c0_i32_0 : i32, i32
  }
  func.func @transform_8(%arg0: i32) -> (i32, i32) {
    %c0_i32 = arith.constant 0 : i32
    %c0_i32_0 = arith.constant 0 : i32
    %c0_i32_1 = arith.constant 0 : i32
    return %c0_i32, %c0_i32_0 : i32, i32
  }
  func.func @transform_9(%arg0: i32) -> (i32, i32) {
    %c0_i32 = arith.constant 0 : i32
    %c0_i32_0 = arith.constant 0 : i32
    %c0_i32_1 = arith.constant 0 : i32
    return %c0_i32, %c0_i32_0 : i32, i32
  }
  func.func @transform_10(%arg0: i32) -> (i32, i32) {
    %c0_i32 = arith.constant 0 : i32
    %c0_i32_0 = arith.constant 0 : i32
    %c0_i32_1 = arith.constant 0 : i32
    return %c0_i32, %c0_i32_0 : i32, i32
  }
  func.func @transform_11(%arg0: i32) -> (i32, i32) {
    %c0_i32 = arith.constant 0 : i32
    %c0_i32_0 = arith.constant 0 : i32
    %c0_i32_1 = arith.constant 0 : i32
    return %c0_i32, %c0_i32_0 : i32, i32
  }
}

</mosaic_0001>

<llo_original>
// kernel: tpu_custom_call.1
$region0: #{tpu_custom_call.1}
  #allocation0 [shape = 'u32[]', space=smem, size = 0x4, offset = 0x4, fixed_abs, tag = 'smem constant byte address 0x4 - core index']
  #allocation1 [shape = 'u32[144,128]{1,0:T(1,128)}', space=vmem, size = 0x12000, scoped, tag = 'internal scratch']
  #allocation2 [shape = 'f32[8,4]{1,0:T(8,128)}', space=vmem, size = 0x1000, scoped, tag = 'scratch operand']
  #allocation3 [shape = 'f32[8,4]{1,0:T(8,128)}', space=vmem, size = 0x1000, scoped, tag = 'scratch operand']
  %s0 = inlined_call_operand.vmem [shape: f32[4,4], index: 0, kind: input, shape index: {}]
  %s1 = inlined_call_operand.vmem [shape: f32[4,4], index: 1, kind: input, shape index: {}]
  %s2 = inlined_call_operand.vmem [shape: f32[4,4], index: 2, kind: input, shape index: {}]
  %s3 = inlined_call_operand.hbm [shape: f32[4,3], index: 3, kind: input, shape index: {}]
  %s4 = inlined_call_operand.hbm [shape: f32[2,4], index: 4, kind: input, shape index: {}]
  %s5 = inlined_call_operand.hbm [shape: f32[2,3], index: 5, kind: input, shape index: {}]
  %s6 = inlined_call_operand.vmem [shape: f32[1,4], index: 6, kind: input, shape index: {}]
  %s7 = inlined_call_operand.vmem [shape: f32[8,3], index: 7, kind: input, shape index: {}]
  %s8 = inlined_call_operand.vmem [shape: f32[4,4], index: 8, kind: input, shape index: {}]
  %s9 = inlined_call_operand.hbm [shape: f32[4,4], index: 9, kind: output, shape index: {0}]
  %s10 = inlined_call_operand.vmem [shape: f32[8,2], index: 10, kind: output, shape index: {1}]
  %s11 = inlined_call_operand.hbm [shape: f32[2,2], index: 11, kind: output, shape index: {2}]
  %12 = xla_tuple %s9, %s10, %s11
  %s13 = sld [smem:[#allocation0]]
  $region74: #{tpu_custom_call.1} parent=0
    _
  %s15 = ssub.s32 1, %s13
  %s16 = scalar_select 0, %s15, %s13
  $region1: #{tpu_custom_call.1} parent=0
    #allocation4 [shape = 'u8[2048]{0}', space=vmem, size = 0x800, scoped, tag = 'input window, operand 3, single buffered']
    #allocation5 [shape = 's32[1]{0}', space=sflag, size = 0x4, scoped, tag = 'scoped memory for tpu_custom_call.1']
    #allocation6 [shape = 's32[1]{0}', space=sflag, size = 0x4, scoped, tag = 'scoped memory for tpu_custom_call.1']
    #allocation7 [shape = 'u8[1024]{0}', space=vmem, size = 0x400, scoped, tag = 'input window, operand 4, single buffered']
    #allocation8 [shape = 's32[1]{0}', space=sflag, size = 0x4, scoped, tag = 'scoped memory for tpu_custom_call.1']
    #allocation9 [shape = 'u8[1024]{0}', space=vmem, size = 0x400, scoped, tag = 'input window, operand 5, single buffered']
    #allocation10 [shape = 'u8[2048]{0}', space=vmem, size = 0x800, scoped, tag = 'output window, operand 0, single buffered']
    #allocation11 [shape = 'u8[1024]{0}', space=vmem, size = 0x400, scoped, tag = 'output window, operand 2, single buffered']
    #allocation12 [shape = 's32[1]{0}', space=sflag, size = 0x4, scoped, tag = 'scoped memory for tpu_custom_call.1']
    %17 = vsyncpa [#allocation5], 0
    %18 = vsyncpa [#allocation8], 0
    %19 = vsyncpa [#allocation6], 0
    %20 = vsyncpa [#allocation12], 0
    // Predicated region
    $region2: #{tpu_custom_call.1} parent=1 // pred_check
      _
    $region3: #{tpu_custom_call.1} parent=1 // pred_check_branch
      %22 = sbr.rel (0) target = $region5
    $region4: #{tpu_custom_call.1} parent=1 // pred_region
      _
    $region5: #{tpu_custom_call.1} parent=1 // pred_fallthru
      _
    // Predicated region
    $region6: #{tpu_custom_call.1} parent=1 // pred_check
      _
    $region7: #{tpu_custom_call.1} parent=1 // pred_check_branch
      %24 = sbr.rel (0) target = $region9
    $region8: #{tpu_custom_call.1} parent=1 // pred_region
      _
    $region9: #{tpu_custom_call.1} parent=1 // pred_fallthru
      _
    // Predicated region
    $region10: #{tpu_custom_call.1} parent=1 // pred_check
      _
    $region11: #{tpu_custom_call.1} parent=1 // pred_check_branch
      %26 = sbr.rel (0) target = $region13
    $region12: #{tpu_custom_call.1} parent=1 // pred_region
      _
    $region13: #{tpu_custom_call.1} parent=1 // pred_fallthru
      _
    // Predicated region
    $region14: #{tpu_custom_call.1} parent=1 // pred_check
      _
    $region15: #{tpu_custom_call.1} parent=1 // pred_check_branch
      %28 = sbr.rel (0) target = $region17
    $region16: #{tpu_custom_call.1} parent=1 // pred_region
      %s30 = ssub.s32 64, 64
      %31 = vsyncadd [#allocation5], %s30
      %s33 = sshll.u32 [#allocation4], 4
      %s34 = int_to_ptr.vmem [resolvable:$true] %s33
      %36 = dma.hbm_to_vmem [thread:$0]  %s3, 64, %s34, [#allocation5]
    $region17: #{tpu_custom_call.1} parent=1 // pred_fallthru
      _
    // Predicated region
    $region18: #{tpu_custom_call.1} parent=1 // pred_check
      _
    $region19: #{tpu_custom_call.1} parent=1 // pred_check_branch
      %38 = sbr.rel (0) target = $region21
    $region20: #{tpu_custom_call.1} parent=1 // pred_region
      %s40 = ssub.s32 32, 32
      %41 = vsyncadd [#allocation8], %s40
      %s43 = sshll.u32 [#allocation7], 4
      %s44 = int_to_ptr.vmem [resolvable:$true] %s43
      %46 = dma.hbm_to_vmem [thread:$0]  %s4, 32, %s44, [#allocation8]
    $region21: #{tpu_custom_call.1} parent=1 // pred_fallthru
      _
    // Predicated region
    $region22: #{tpu_custom_call.1} parent=1 // pred_check
      _
    $region23: #{tpu_custom_call.1} parent=1 // pred_check_branch
      %48 = sbr.rel (0) target = $region25
    $region24: #{tpu_custom_call.1} parent=1 // pred_region
      %s50 = ssub.s32 32, 32
      %51 = vsyncadd [#allocation8], %s50
      %s53 = sshll.u32 [#allocation9], 4
      %s54 = int_to_ptr.vmem [resolvable:$true] %s53
      %56 = dma.hbm_to_vmem [thread:$0]  %s5, 32, %s54, [#allocation8]
    $region25: #{tpu_custom_call.1} parent=1 // pred_fallthru
      _
    // Predicated region
    $region26: #{tpu_custom_call.1} parent=1 // pred_check
      _
    $region27: #{tpu_custom_call.1} parent=1 // pred_check_branch
      %58 = sbr.rel (0) target = $region29
    $region28: #{tpu_custom_call.1} parent=1 // pred_region
      _
    $region29: #{tpu_custom_call.1} parent=1 // pred_fallthru
      _
    // Predicated region
    $region30: #{tpu_custom_call.1} parent=1 // pred_check
      _
    $region31: #{tpu_custom_call.1} parent=1 // pred_check_branch
      %60 = sbr.rel (0) target = $region33
    $region32: #{tpu_custom_call.1} parent=1 // pred_region
      _
    $region33: #{tpu_custom_call.1} parent=1 // pred_fallthru
      _
    // Predicated region
    $region34: #{tpu_custom_call.1} parent=1 // pred_check
      _
    $region35: #{tpu_custom_call.1} parent=1 // pred_check_branch
      %62 = sbr.rel (0) target = $region37
    $region36: #{tpu_custom_call.1} parent=1 // pred_region
      _
    $region37: #{tpu_custom_call.1} parent=1 // pred_fallthru
      _
    // Predicated region
    $region38: #{tpu_custom_call.1} parent=1 // pred_check
      _
    $region39: #{tpu_custom_call.1} parent=1 // pred_check_branch
      %64 = sbr.rel (0) target = $region41
    $region40: #{tpu_custom_call.1} parent=1 // pred_region
      %65 = dma.done [#allocation5], 64
    $region41: #{tpu_custom_call.1} parent=1 // pred_fallthru
      _
    // Predicated region
    $region42: #{tpu_custom_call.1} parent=1 // pred_check
      _
    $region43: #{tpu_custom_call.1} parent=1 // pred_check_branch
      %67 = sbr.rel (0) target = $region45
    $region44: #{tpu_custom_call.1} parent=1 // pred_region
      %68 = dma.done [#allocation8], 32
    $region45: #{tpu_custom_call.1} parent=1 // pred_fallthru
      _
    // Predicated region
    $region46: #{tpu_custom_call.1} parent=1 // pred_check
      _
    $region47: #{tpu_custom_call.1} parent=1 // pred_check_branch
      %70 = sbr.rel (0) target = $region49
    $region48: #{tpu_custom_call.1} parent=1 // pred_region
      %71 = dma.done [#allocation8], 32
    $region49: #{tpu_custom_call.1} parent=1 // pred_fallthru
      _
    %v72 = vlaneseq
    %v73 = vshrl.u32 %v72, 7
    %v74 = vlaneseq
    %v75 = vand.u32 %v74, 127
    %vm76 = vcmp.eq.s32.totalorder %v73, %v75
    %v77 = vsel %vm76, 1.0, 0.0
    %v78 = vld [vmem:[%s0] sm:$0xf]
    %v79 = vld [vmem:[%s1] sm:$0xf]
    %v80 = vld [vmem:[%s2] sm:$0xf]
    %v81 = vsel %vm76, %v78, 0.0
    %vm82 = vcmask 27648
    %v83 = vsel %vm82, %v81, 0.0
    %84 = vadd.xlane.f32.xlu0 %v83
    %v85 = vpop.xlane.xlu0 %84
    %v86 = vand.u32 2147483647, %v85
    %v87 = vadd.f32 %v86, 0.01
    %v88 = vmul.f32 %v87, %v87
    %v89 = vrcp.pop %v88
    %v90 = vmul.f32 1.0, %v89
    %v91 = vsel %vm76, %v79, 0.0
    %v92 = vsel %vm82, %v91, 0.0
    %93 = vadd.xlane.f32.xlu0 %v92
    %v94 = vpop.xlane.xlu0 %93
    %vm95 = vcmp.gt.s32.totalorder %v73, %v75
    %v96 = vsel %vm95, %v79, 0.0
    %v97 = vand.u32 2147483647, %v94
    %v98 = vadd.f32 %v97, 0.01
    %v99 = vsel %vm76, %v98, 0.0
    %v100 = vadd.f32 %v96, %v99
    %vm101 = vcmp.gt.s32.totalorder %v75, %v73
    %v102 = vsel %vm101, %v80, 0.0
    %103 = vxpose.xlu0.b32.start [1/16] %v102, 128
    %104 = vxpose.xlu0.b32.cont [2/16] 0.0, 128
    %105 = vxpose.xlu0.b32.cont [3/16] 0.0, 128
    %106 = vxpose.xlu0.b32.cont [4/16] 0.0, 128
    %107 = vxpose.xlu0.b32.cont [5/16] 0.0, 128
    %108 = vxpose.xlu0.b32.cont [6/16] 0.0, 128
    %109 = vxpose.xlu0.b32.cont [7/16] 0.0, 128
    %110 = vxpose.xlu0.b32.cont [8/16] 0.0, 128
    %111 = vxpose.xlu0.b32.cont [9/16] 0.0, 128
    %112 = vxpose.xlu0.b32.cont [10/16] 0.0, 128
    %113 = vxpose.xlu0.b32.cont [11/16] 0.0, 128
    %114 = vxpose.xlu0.b32.cont [12/16] 0.0, 128
    %115 = vxpose.xlu0.b32.cont [13/16] 0.0, 128
    %116 = vxpose.xlu0.b32.cont [14/16] 0.0, 128
    %117 = vxpose.xlu0.b32.cont [15/16] 0.0, 128
    %118 = vxpose.xlu0.b32.end [16/16] 0.0, 128
    %v119 = vpop.trf.xlu0
    %v120 = vpop.trf.xlu0
    %v121 = vpop.trf.xlu0
    %v122 = vpop.trf.xlu0
    %v123 = vpop.trf.xlu0
    %v124 = vpop.trf.xlu0
    %v125 = vpop.trf.xlu0
    %v126 = vpop.trf.xlu0
    %v127 = vpop.trf.xlu0
    %v128 = vpop.trf.xlu0
    %v129 = vpop.trf.xlu0
    %v130 = vpop.trf.xlu0
    %v131 = vpop.trf.xlu0
    %v132 = vpop.trf.xlu0
    %v133 = vpop.trf.xlu0
    %v134 = vpop.trf.xlu0
    %v135 = vsub.f32 %v102, %v119
    %vm136 = vcmask 31744
    %v138 = vsel %vm136, %v100, 0
    %140 = vmatprep.subr.mxu0 0.0
    %141 = vmatpush1.xpose.msra.mxu0 0.0
    %142 = vmatprep.subr.mxu0 0.0
    %143 = vmatpush1.xpose.msra.mxu0 0.0
    %144 = vmatprep.subr.mxu0 0.0
    %145 = vmatpush1.xpose.msra.mxu0 0.0
    %146 = vmatprep.subr.mxu0 0.0
    %147 = vmatpush1.xpose.msra.mxu0 0.0
    %148 = vmatprep.subr.mxu0 0.0
    %149 = vmatpush1.xpose.msra.mxu0 0.0
    %150 = vmatprep.subr.mxu0 0.0
    %151 = vmatpush1.xpose.msra.mxu0 0.0
    %152 = vmatprep.subr.mxu0 0.0
    %153 = vmatpush1.xpose.msra.mxu0 0.0
    %154 = vmatprep.subr.mxu0 0.0
    %155 = vmatpush1.xpose.msra.mxu0 0.0
    %156 = vmatprep.subr.mxu0 0.0
    %157 = vmatpush1.xpose.msra.mxu0 0.0
    %158 = vmatprep.subr.mxu0 0.0
    %159 = vmatpush1.xpose.msra.mxu0 0.0
    %160 = vmatprep.subr.mxu0 0.0
    %161 = vmatpush1.xpose.msra.mxu0 0.0
    %162 = vmatprep.subr.mxu0 0.0
    %163 = vmatpush1.xpose.msra.mxu0 0.0
    %164 = vmatprep.subr.mxu0 0.0
    %165 = vmatpush1.xpose.msra.mxu0 0.0
    %166 = vmatprep.subr.mxu0 0.0
    %167 = vmatpush1.xpose.msra.mxu0 0.0
    %168 = vmatprep.subr.mxu0 0.0
    %169 = vmatpush1.xpose.msra.mxu0 0.0
    %170 = vmatprep.subr.mxu0 0.0
    %171 = vmatpush1.xpose.msra.mxu0 %v138
    %172 = vmatprep.subr.mxu0 0.0
    %173 = vmatpush2.xpose.msra.mxu0 0.0
    %174 = vmatprep.subr.mxu0 0.0
    %175 = vmatpush2.xpose.msra.mxu0 0.0
    %176 = vmatprep.subr.mxu0 0.0
    %177 = vmatpush2.xpose.msra.mxu0 0.0
    %178 = vmatprep.subr.mxu0 0.0
    %179 = vmatpush2.xpose.msra.mxu0 0.0
    %180 = vmatprep.subr.mxu0 0.0
    %181 = vmatpush2.xpose.msra.mxu0 0.0
    %182 = vmatprep.subr.mxu0 0.0
    %183 = vmatpush2.xpose.msra.mxu0 0.0
    %184 = vmatprep.subr.mxu0 0.0
    %185 = vmatpush2.xpose.msra.mxu0 0.0
    %186 = vmatprep.subr.mxu0 0.0
    %187 = vmatpush2.xpose.msra.mxu0 0.0
    %188 = vmatprep.subr.mxu0 0.0
    %189 = vmatpush2.xpose.msra.mxu0 0.0
    %190 = vmatprep.subr.mxu0 0.0
    %191 = vmatpush2.xpose.msra.mxu0 0.0
    %192 = vmatprep.subr.mxu0 0.0
    %193 = vmatpush2.xpose.msra.mxu0 0.0
    %194 = vmatprep.subr.mxu0 0.0
    %195 = vmatpush2.xpose.msra.mxu0 0.0
    %196 = vmatprep.subr.mxu0 0.0
    %197 = vmatpush2.xpose.msra.mxu0 0.0
    %198 = vmatprep.subr.mxu0 0.0
    %199 = vmatpush2.xpose.msra.mxu0 0.0
    %200 = vmatprep.subr.mxu0 0.0
    %201 = vmatpush2.xpose.msra.mxu0 0.0
    %202 = vmatprep.subr.mxu0 0.0
    %203 = vmatpush2.xpose.msra.mxu0 0.0
    %204 = vmatprep.mubr.f32.mxu0 0.0
    %205 = vmatmul.mubr.f32.gmra.mxu0 %v138
    %v206 = vpop.f32.mrf.mxu0
    %v207 = vadd.f32 0.0, %v206
    %v208 = vpop.f32.mrf.mxu0
    %209 = vdwg.mxu0
    %v210 = vmul.f32 %v207, -0.5
    %v211 = vadd.f32 %v210, %v135
    %v212 = vmul.f32 %v90, %v211
    %v213 = vmul.f32 %v77, 0.1
    %v214 = vsub.f32 %v212, %v213
    %215 = vst.msk [vmem:[#allocation10] sm:$0xf] %vm82, %v214
    %v216 = vld [vmem:[#allocation4] sm:$0xf]
    %v217 = vld [vmem:[#allocation7] sm:$0x3]
    %v218 = vld [vmem:[#allocation9] sm:$0x3]
    %v219 = vmul.f32 %v214, 0.1
    %v220 = vadd.f32 %v77, %v219
    %v221 = vld [vmem:[%s7] sm:$0xff]
    %vm222 = vcmask 23552
    %v224 = vsel %vm222, %v221, 0
    %v227 = vsel %vm222, %v216, 0
    %229 = vmatprep.subr.mxu0 0.0
    %230 = vmatpush1.xpose.msra.mxu0 0.0
    %231 = vmatprep.subr.mxu0 0.0
    %232 = vmatpush1.xpose.msra.mxu0 0.0
    %233 = vmatprep.subr.mxu0 0.0
    %234 = vmatpush1.xpose.msra.mxu0 0.0
    %235 = vmatprep.subr.mxu0 0.0
    %236 = vmatpush1.xpose.msra.mxu0 0.0
    %237 = vmatprep.subr.mxu0 0.0
    %238 = vmatpush1.xpose.msra.mxu0 0.0
    %239 = vmatprep.subr.mxu0 0.0
    %240 = vmatpush1.xpose.msra.mxu0 0.0
    %241 = vmatprep.subr.mxu0 0.0
    %242 = vmatpush1.xpose.msra.mxu0 0.0
    %243 = vmatprep.subr.mxu0 0.0
    %244 = vmatpush1.xpose.msra.mxu0 0.0
    %245 = vmatprep.subr.mxu0 0.0
    %246 = vmatpush1.xpose.msra.mxu0 0.0
    %247 = vmatprep.subr.mxu0 0.0
    %248 = vmatpush1.xpose.msra.mxu0 0.0
    %249 = vmatprep.subr.mxu0 0.0
    %250 = vmatpush1.xpose.msra.mxu0 0.0
    %251 = vmatprep.subr.mxu0 0.0
    %252 = vmatpush1.xpose.msra.mxu0 0.0
    %253 = vmatprep.subr.mxu0 0.0
    %254 = vmatpush1.xpose.msra.mxu0 0.0
    %255 = vmatprep.subr.mxu0 0.0
    %256 = vmatpush1.xpose.msra.mxu0 0.0
    %257 = vmatprep.subr.mxu0 0.0
    %258 = vmatpush1.xpose.msra.mxu0 0.0
    %259 = vmatprep.subr.mxu0 0.0
    %260 = vmatpush1.xpose.msra.mxu0 %v227
    %261 = vmatprep.subr.mxu0 0.0
    %262 = vmatpush2.xpose.msra.mxu0 0.0
    %263 = vmatprep.subr.mxu0 0.0
    %264 = vmatpush2.xpose.msra.mxu0 0.0
    %265 = vmatprep.subr.mxu0 0.0
    %266 = vmatpush2.xpose.msra.mxu0 0.0
    %267 = vmatprep.subr.mxu0 0.0
    %268 = vmatpush2.xpose.msra.mxu0 0.0
    %269 = vmatprep.subr.mxu0 0.0
    %270 = vmatpush2.xpose.msra.mxu0 0.0
    %271 = vmatprep.subr.mxu0 0.0
    %272 = vmatpush2.xpose.msra.mxu0 0.0
    %273 = vmatprep.subr.mxu0 0.0
    %274 = vmatpush2.xpose.msra.mxu0 0.0
    %275 = vmatprep.subr.mxu0 0.0
    %276 = vmatpush2.xpose.msra.mxu0 0.0
    %277 = vmatprep.subr.mxu0 0.0
    %278 = vmatpush2.xpose.msra.mxu0 0.0
    %279 = vmatprep.subr.mxu0 0.0
    %280 = vmatpush2.xpose.msra.mxu0 0.0
    %281 = vmatprep.subr.mxu0 0.0
    %282 = vmatpush2.xpose.msra.mxu0 0.0
    %283 = vmatprep.subr.mxu0 0.0
    %284 = vmatpush2.xpose.msra.mxu0 0.0
    %285 = vmatprep.subr.mxu0 0.0
    %286 = vmatpush2.xpose.msra.mxu0 0.0
    %287 = vmatprep.subr.mxu0 0.0
    %288 = vmatpush2.xpose.msra.mxu0 0.0
    %289 = vmatprep.subr.mxu0 0.0
    %290 = vmatpush2.xpose.msra.mxu0 0.0
    %291 = vmatprep.subr.mxu0 0.0
    %292 = vmatpush2.xpose.msra.mxu0 0.0
    %293 = vmatprep.mubr.f32.mxu0 0.0
    %294 = vmatmul.mubr.f32.gmra.mxu0 %v224
    %v295 = vpop.f32.mrf.mxu0
    %v296 = vadd.f32 0.0, %v295
    %v297 = vpop.f32.mrf.mxu0
    %298 = vdwg.mxu0
    %v299 = vmul.f32 %v296, 0.1
    %300 = vst.msk [vmem:[#allocation3] sm:$0xff] %vm136, %v299
    %v301 = vld [vmem:[%s6] sm:$0x1]
    %vm302 = vcmask 24576
    %303 = vst.msk [vmem:[#allocation2] sm:$0x1] %vm302, %v301
    %v304 = vld [vmem:[#allocation3] sm:$0x1]
    %v306 = vsel %vm136, %v301, 0
    %v309 = vsel %vm136, %v220, 0
    %311 = vmatprep.subr.mxu0 0.0
    %312 = vmatpush1.xpose.msra.mxu0 0.0
    %313 = vmatprep.subr.mxu0 0.0
    %314 = vmatpush1.xpose.msra.mxu0 0.0
    %315 = vmatprep.subr.mxu0 0.0
    %316 = vmatpush1.xpose.msra.mxu0 0.0
    %317 = vmatprep.subr.mxu0 0.0
    %318 = vmatpush1.xpose.msra.mxu0 0.0
    %319 = vmatprep.subr.mxu0 0.0
    %320 = vmatpush1.xpose.msra.mxu0 0.0
    %321 = vmatprep.subr.mxu0 0.0
    %322 = vmatpush1.xpose.msra.mxu0 0.0
    %323 = vmatprep.subr.mxu0 0.0
    %324 = vmatpush1.xpose.msra.mxu0 0.0
    %325 = vmatprep.subr.mxu0 0.0
    %326 = vmatpush1.xpose.msra.mxu0 0.0
    %327 = vmatprep.subr.mxu0 0.0
    %328 = vmatpush1.xpose.msra.mxu0 0.0
    %329 = vmatprep.subr.mxu0 0.0
    %330 = vmatpush1.xpose.msra.mxu0 0.0
    %331 = vmatprep.subr.mxu0 0.0
    %332 = vmatpush1.xpose.msra.mxu0 0.0
    %333 = vmatprep.subr.mxu0 0.0
    %334 = vmatpush1.xpose.msra.mxu0 0.0
    %335 = vmatprep.subr.mxu0 0.0
    %336 = vmatpush1.xpose.msra.mxu0 0.0
    %337 = vmatprep.subr.mxu0 0.0
    %338 = vmatpush1.xpose.msra.mxu0 0.0
    %339 = vmatprep.subr.mxu0 0.0
    %340 = vmatpush1.xpose.msra.mxu0 0.0
    %341 = vmatprep.subr.mxu0 0.0
    %342 = vmatpush1.xpose.msra.mxu0 %v309
    %343 = vmatprep.subr.mxu0 0.0
    %344 = vmatpush2.xpose.msra.mxu0 0.0
    %345 = vmatprep.subr.mxu0 0.0
    %346 = vmatpush2.xpose.msra.mxu0 0.0
    %347 = vmatprep.subr.mxu0 0.0
    %348 = vmatpush2.xpose.msra.mxu0 0.0
    %349 = vmatprep.subr.mxu0 0.0
    %350 = vmatpush2.xpose.msra.mxu0 0.0
    %351 = vmatprep.subr.mxu0 0.0
    %352 = vmatpush2.xpose.msra.mxu0 0.0
    %353 = vmatprep.subr.mxu0 0.0
    %354 = vmatpush2.xpose.msra.mxu0 0.0
    %355 = vmatprep.subr.mxu0 0.0
    %356 = vmatpush2.xpose.msra.mxu0 0.0
    %357 = vmatprep.subr.mxu0 0.0
    %358 = vmatpush2.xpose.msra.mxu0 0.0
    %359 = vmatprep.subr.mxu0 0.0
    %360 = vmatpush2.xpose.msra.mxu0 0.0
    %361 = vmatprep.subr.mxu0 0.0
    %362 = vmatpush2.xpose.msra.mxu0 0.0
    %363 = vmatprep.subr.mxu0 0.0
    %364 = vmatpush2.xpose.msra.mxu0 0.0
    %365 = vmatprep.subr.mxu0 0.0
    %366 = vmatpush2.xpose.msra.mxu0 0.0
    %367 = vmatprep.subr.mxu0 0.0
    %368 = vmatpush2.xpose.msra.mxu0 0.0
    %369 = vmatprep.subr.mxu0 0.0
    %370 = vmatpush2.xpose.msra.mxu0 0.0
    %371 = vmatprep.subr.mxu0 0.0
    %372 = vmatpush2.xpose.msra.mxu0 0.0
    %373 = vmatprep.subr.mxu0 0.0
    %374 = vmatpush2.xpose.msra.mxu0 0.0
    %375 = vmatprep.mubr.f32.mxu0 0.0
    %376 = vmatmul.mubr.f32.gmra.mxu0 %v306
    %v377 = vpop.f32.mrf.mxu0
    %v378 = vadd.f32 %v304, %v377
    %v379 = vpop.f32.mrf.mxu0
    %380 = vdwg.mxu0
    %381 = vst.msk [vmem:[#allocation2 + $0x1] sm:$0x1] %vm302, %v378
    %v382 = vld [vmem:[#allocation3 + $0x1] sm:$0x1]
    %v384 = vsel %vm136, %v378, 0
    %386 = vmatprep.subr.mxu0 0.0
    %387 = vmatpush1.xpose.msra.mxu0 0.0
    %388 = vmatprep.subr.mxu0 0.0
    %389 = vmatpush1.xpose.msra.mxu0 0.0
    %390 = vmatprep.subr.mxu0 0.0
    %391 = vmatpush1.xpose.msra.mxu0 0.0
    %392 = vmatprep.subr.mxu0 0.0
    %393 = vmatpush1.xpose.msra.mxu0 0.0
    %394 = vmatprep.subr.mxu0 0.0
    %395 = vmatpush1.xpose.msra.mxu0 0.0
    %396 = vmatprep.subr.mxu0 0.0
    %397 = vmatpush1.xpose.msra.mxu0 0.0
    %398 = vmatprep.subr.mxu0 0.0
    %399 = vmatpush1.xpose.msra.mxu0 0.0
    %400 = vmatprep.subr.mxu0 0.0
    %401 = vmatpush1.xpose.msra.mxu0 0.0
    %402 = vmatprep.subr.mxu0 0.0
    %403 = vmatpush1.xpose.msra.mxu0 0.0
    %404 = vmatprep.subr.mxu0 0.0
    %405 = vmatpush1.xpose.msra.mxu0 0.0
    %406 = vmatprep.subr.mxu0 0.0
    %407 = vmatpush1.xpose.msra.mxu0 0.0
    %408 = vmatprep.subr.mxu0 0.0
    %409 = vmatpush1.xpose.msra.mxu0 0.0
    %410 = vmatprep.subr.mxu0 0.0
    %411 = vmatpush1.xpose.msra.mxu0 0.0
    %412 = vmatprep.subr.mxu0 0.0
    %413 = vmatpush1.xpose.msra.mxu0 0.0
    %414 = vmatprep.subr.mxu0 0.0
    %415 = vmatpush1.xpose.msra.mxu0 0.0
    %416 = vmatprep.subr.mxu0 0.0
    %417 = vmatpush1.xpose.msra.mxu0 %v309
    %418 = vmatprep.subr.mxu0 0.0
    %419 = vmatpush2.xpose.msra.mxu0 0.0
    %420 = vmatprep.subr.mxu0 0.0
    %421 = vmatpush2.xpose.msra.mxu0 0.0
    %422 = vmatprep.subr.mxu0 0.0
    %423 = vmatpush2.xpose.msra.mxu0 0.0
    %424 = vmatprep.subr.mxu0 0.0
    %425 = vmatpush2.xpose.msra.mxu0 0.0
    %426 = vmatprep.subr.mxu0 0.0
    %427 = vmatpush2.xpose.msra.mxu0 0.0
    %428 = vmatprep.subr.mxu0 0.0
    %429 = vmatpush2.xpose.msra.mxu0 0.0
    %430 = vmatprep.subr.mxu0 0.0
    %431 = vmatpush2.xpose.msra.mxu0 0.0
    %432 = vmatprep.subr.mxu0 0.0
    %433 = vmatpush2.xpose.msra.mxu0 0.0
    %434 = vmatprep.subr.mxu0 0.0
    %435 = vmatpush2.xpose.msra.mxu0 0.0
    %436 = vmatprep.subr.mxu0 0.0
    %437 = vmatpush2.xpose.msra.mxu0 0.0
    %438 = vmatprep.subr.mxu0 0.0
    %439 = vmatpush2.xpose.msra.mxu0 0.0
    %440 = vmatprep.subr.mxu0 0.0
    %441 = vmatpush2.xpose.msra.mxu0 0.0
    %442 = vmatprep.subr.mxu0 0.0
    %443 = vmatpush2.xpose.msra.mxu0 0.0
    %444 = vmatprep.subr.mxu0 0.0
    %445 = vmatpush2.xpose.msra.mxu0 0.0
    %446 = vmatprep.subr.mxu0 0.0
    %447 = vmatpush2.xpose.msra.mxu0 0.0
    %448 = vmatprep.subr.mxu0 0.0
    %449 = vmatpush2.xpose.msra.mxu0 0.0
    %450 = vmatprep.mubr.f32.mxu0 0.0
    %451 = vmatmul.mubr.f32.gmra.mxu0 %v384
    %v452 = vpop.f32.mrf.mxu0
    %v453 = vadd.f32 %v382, %v452
    %v454 = vpop.f32.mrf.mxu0
    %455 = vdwg.mxu0
    %456 = vst.msk [vmem:[#allocation2 + $0x2] sm:$0x1] %vm302, %v453
    %v457 = vld [vmem:[#allocation3 + $0x2] sm:$0x1]
    %v459 = vsel %vm136, %v453, 0
    %461 = vmatprep.subr.mxu0 0.0
    %462 = vmatpush1.xpose.msra.mxu0 0.0
    %463 = vmatprep.subr.mxu0 0.0
    %464 = vmatpush1.xpose.msra.mxu0 0.0
    %465 = vmatprep.subr.mxu0 0.0
    %466 = vmatpush1.xpose.msra.mxu0 0.0
    %467 = vmatprep.subr.mxu0 0.0
    %468 = vmatpush1.xpose.msra.mxu0 0.0
    %469 = vmatprep.subr.mxu0 0.0
    %470 = vmatpush1.xpose.msra.mxu0 0.0
    %471 = vmatprep.subr.mxu0 0.0
    %472 = vmatpush1.xpose.msra.mxu0 0.0
    %473 = vmatprep.subr.mxu0 0.0
    %474 = vmatpush1.xpose.msra.mxu0 0.0
    %475 = vmatprep.subr.mxu0 0.0
    %476 = vmatpush1.xpose.msra.mxu0 0.0
    %477 = vmatprep.subr.mxu0 0.0
    %478 = vmatpush1.xpose.msra.mxu0 0.0
    %479 = vmatprep.subr.mxu0 0.0
    %480 = vmatpush1.xpose.msra.mxu0 0.0
    %481 = vmatprep.subr.mxu0 0.0
    %482 = vmatpush1.xpose.msra.mxu0 0.0
    %483 = vmatprep.subr.mxu0 0.0
    %484 = vmatpush1.xpose.msra.mxu0 0.0
    %485 = vmatprep.subr.mxu0 0.0
    %486 = vmatpush1.xpose.msra.mxu0 0.0
    %487 = vmatprep.subr.mxu0 0.0
    %488 = vmatpush1.xpose.msra.mxu0 0.0
    %489 = vmatprep.subr.mxu0 0.0
    %490 = vmatpush1.xpose.msra.mxu0 0.0
    %491 = vmatprep.subr.mxu0 0.0
    %492 = vmatpush1.xpose.msra.mxu0 %v309
    %493 = vmatprep.subr.mxu0 0.0
    %494 = vmatpush2.xpose.msra.mxu0 0.0
    %495 = vmatprep.subr.mxu0 0.0
    %496 = vmatpush2.xpose.msra.mxu0 0.0
    %497 = vmatprep.subr.mxu0 0.0
    %498 = vmatpush2.xpose.msra.mxu0 0.0
    %499 = vmatprep.subr.mxu0 0.0
    %500 = vmatpush2.xpose.msra.mxu0 0.0
    %501 = vmatprep.subr.mxu0 0.0
    %502 = vmatpush2.xpose.msra.mxu0 0.0
    %503 = vmatprep.subr.mxu0 0.0
    %504 = vmatpush2.xpose.msra.mxu0 0.0
    %505 = vmatprep.subr.mxu0 0.0
    %506 = vmatpush2.xpose.msra.mxu0 0.0
    %507 = vmatprep.subr.mxu0 0.0
    %508 = vmatpush2.xpose.msra.mxu0 0.0
    %509 = vmatprep.subr.mxu0 0.0
    %510 = vmatpush2.xpose.msra.mxu0 0.0
    %511 = vmatprep.subr.mxu0 0.0
    %512 = vmatpush2.xpose.msra.mxu0 0.0
    %513 = vmatprep.subr.mxu0 0.0
    %514 = vmatpush2.xpose.msra.mxu0 0.0
    %515 = vmatprep.subr.mxu0 0.0
    %516 = vmatpush2.xpose.msra.mxu0 0.0
    %517 = vmatprep.subr.mxu0 0.0
    %518 = vmatpush2.xpose.msra.mxu0 0.0
    %519 = vmatprep.subr.mxu0 0.0
    %520 = vmatpush2.xpose.msra.mxu0 0.0
    %521 = vmatprep.subr.mxu0 0.0
    %522 = vmatpush2.xpose.msra.mxu0 0.0
    %523 = vmatprep.subr.mxu0 0.0
    %524 = vmatpush2.xpose.msra.mxu0 0.0
    %525 = vmatprep.mubr.f32.mxu0 0.0
    %526 = vmatmul.mubr.f32.gmra.mxu0 %v459
    %v527 = vpop.f32.mrf.mxu0
    %v528 = vadd.f32 %v457, %v527
    %v529 = vpop.f32.mrf.mxu0
    %530 = vdwg.mxu0
    %531 = vst.msk [vmem:[#allocation2 + $0x3] sm:$0x1] %vm302, %v528
    %v532 = vld [vmem:[#allocation3 + $0x3] sm:$0x1]
    %v534 = vsel %vm136, %v528, 0
    %536 = vmatprep.subr.mxu0 0.0
    %537 = vmatpush1.xpose.msra.mxu0 0.0
    %538 = vmatprep.subr.mxu0 0.0
    %539 = vmatpush1.xpose.msra.mxu0 0.0
    %540 = vmatprep.subr.mxu0 0.0
    %541 = vmatpush1.xpose.msra.mxu0 0.0
    %542 = vmatprep.subr.mxu0 0.0
    %543 = vmatpush1.xpose.msra.mxu0 0.0
    %544 = vmatprep.subr.mxu0 0.0
    %545 = vmatpush1.xpose.msra.mxu0 0.0
    %546 = vmatprep.subr.mxu0 0.0
    %547 = vmatpush1.xpose.msra.mxu0 0.0
    %548 = vmatprep.subr.mxu0 0.0
    %549 = vmatpush1.xpose.msra.mxu0 0.0
    %550 = vmatprep.subr.mxu0 0.0
    %551 = vmatpush1.xpose.msra.mxu0 0.0
    %552 = vmatprep.subr.mxu0 0.0
    %553 = vmatpush1.xpose.msra.mxu0 0.0
    %554 = vmatprep.subr.mxu0 0.0
    %555 = vmatpush1.xpose.msra.mxu0 0.0
    %556 = vmatprep.subr.mxu0 0.0
    %557 = vmatpush1.xpose.msra.mxu0 0.0
    %558 = vmatprep.subr.mxu0 0.0
    %559 = vmatpush1.xpose.msra.mxu0 0.0
    %560 = vmatprep.subr.mxu0 0.0
    %561 = vmatpush1.xpose.msra.mxu0 0.0
    %562 = vmatprep.subr.mxu0 0.0
    %563 = vmatpush1.xpose.msra.mxu0 0.0
    %564 = vmatprep.subr.mxu0 0.0
    %565 = vmatpush1.xpose.msra.mxu0 0.0
    %566 = vmatprep.subr.mxu0 0.0
    %567 = vmatpush1.xpose.msra.mxu0 %v309
    %568 = vmatprep.subr.mxu0 0.0
    %569 = vmatpush2.xpose.msra.mxu0 0.0
    %570 = vmatprep.subr.mxu0 0.0
    %571 = vmatpush2.xpose.msra.mxu0 0.0
    %572 = vmatprep.subr.mxu0 0.0
    %573 = vmatpush2.xpose.msra.mxu0 0.0
    %574 = vmatprep.subr.mxu0 0.0
    %575 = vmatpush2.xpose.msra.mxu0 0.0
    %576 = vmatprep.subr.mxu0 0.0
    %577 = vmatpush2.xpose.msra.mxu0 0.0
    %578 = vmatprep.subr.mxu0 0.0
    %579 = vmatpush2.xpose.msra.mxu0 0.0
    %580 = vmatprep.subr.mxu0 0.0
    %581 = vmatpush2.xpose.msra.mxu0 0.0
    %582 = vmatprep.subr.mxu0 0.0
    %583 = vmatpush2.xpose.msra.mxu0 0.0
    %584 = vmatprep.subr.mxu0 0.0
    %585 = vmatpush2.xpose.msra.mxu0 0.0
    %586 = vmatprep.subr.mxu0 0.0
    %587 = vmatpush2.xpose.msra.mxu0 0.0
    %588 = vmatprep.subr.mxu0 0.0
    %589 = vmatpush2.xpose.msra.mxu0 0.0
    %590 = vmatprep.subr.mxu0 0.0
    %591 = vmatpush2.xpose.msra.mxu0 0.0
    %592 = vmatprep.subr.mxu0 0.0
    %593 = vmatpush2.xpose.msra.mxu0 0.0
    %594 = vmatprep.subr.mxu0 0.0
    %595 = vmatpush2.xpose.msra.mxu0 0.0
    %596 = vmatprep.subr.mxu0 0.0
    %597 = vmatpush2.xpose.msra.mxu0 0.0
    %598 = vmatprep.subr.mxu0 0.0
    %599 = vmatpush2.xpose.msra.mxu0 0.0
    %600 = vmatprep.mubr.f32.mxu0 0.0
    %601 = vmatmul.mubr.f32.gmra.mxu0 %v534
    %v602 = vpop.f32.mrf.mxu0
    %v603 = vadd.f32 %v532, %v602
    %v604 = vpop.f32.mrf.mxu0
    %605 = vdwg.mxu0
    %606 = vst.msk [vmem:[#allocation2 + $0x4] sm:$0x1] %vm302, %v603
    %v607 = vld [vmem:[#allocation3 + $0x4] sm:$0x1]
    %v609 = vsel %vm136, %v603, 0
    %611 = vmatprep.subr.mxu0 0.0
    %612 = vmatpush1.xpose.msra.mxu0 0.0
    %613 = vmatprep.subr.mxu0 0.0
    %614 = vmatpush1.xpose.msra.mxu0 0.0
    %615 = vmatprep.subr.mxu0 0.0
    %616 = vmatpush1.xpose.msra.mxu0 0.0
    %617 = vmatprep.subr.mxu0 0.0
    %618 = vmatpush1.xpose.msra.mxu0 0.0
    %619 = vmatprep.subr.mxu0 0.0
    %620 = vmatpush1.xpose.msra.mxu0 0.0
    %621 = vmatprep.subr.mxu0 0.0
    %622 = vmatpush1.xpose.msra.mxu0 0.0
    %623 = vmatprep.subr.mxu0 0.0
    %624 = vmatpush1.xpose.msra.mxu0 0.0
    %625 = vmatprep.subr.mxu0 0.0
    %626 = vmatpush1.xpose.msra.mxu0 0.0
    %627 = vmatprep.subr.mxu0 0.0
    %628 = vmatpush1.xpose.msra.mxu0 0.0
    %629 = vmatprep.subr.mxu0 0.0
    %630 = vmatpush1.xpose.msra.mxu0 0.0
    %631 = vmatprep.subr.mxu0 0.0
    %632 = vmatpush1.xpose.msra.mxu0 0.0
    %633 = vmatprep.subr.mxu0 0.0
    %634 = vmatpush1.xpose.msra.mxu0 0.0
    %635 = vmatprep.subr.mxu0 0.0
    %636 = vmatpush1.xpose.msra.mxu0 0.0
    %637 = vmatprep.subr.mxu0 0.0
    %638 = vmatpush1.xpose.msra.mxu0 0.0
    %639 = vmatprep.subr.mxu0 0.0
    %640 = vmatpush1.xpose.msra.mxu0 0.0
    %641 = vmatprep.subr.mxu0 0.0
    %642 = vmatpush1.xpose.msra.mxu0 %v309
    %643 = vmatprep.subr.mxu0 0.0
    %644 = vmatpush2.xpose.msra.mxu0 0.0
    %645 = vmatprep.subr.mxu0 0.0
    %646 = vmatpush2.xpose.msra.mxu0 0.0
    %647 = vmatprep.subr.mxu0 0.0
    %648 = vmatpush2.xpose.msra.mxu0 0.0
    %649 = vmatprep.subr.mxu0 0.0
    %650 = vmatpush2.xpose.msra.mxu0 0.0
    %651 = vmatprep.subr.mxu0 0.0
    %652 = vmatpush2.xpose.msra.mxu0 0.0
    %653 = vmatprep.subr.mxu0 0.0
    %654 = vmatpush2.xpose.msra.mxu0 0.0
    %655 = vmatprep.subr.mxu0 0.0
    %656 = vmatpush2.xpose.msra.mxu0 0.0
    %657 = vmatprep.subr.mxu0 0.0
    %658 = vmatpush2.xpose.msra.mxu0 0.0
    %659 = vmatprep.subr.mxu0 0.0
    %660 = vmatpush2.xpose.msra.mxu0 0.0
    %661 = vmatprep.subr.mxu0 0.0
    %662 = vmatpush2.xpose.msra.mxu0 0.0
    %663 = vmatprep.subr.mxu0 0.0
    %664 = vmatpush2.xpose.msra.mxu0 0.0
    %665 = vmatprep.subr.mxu0 0.0
    %666 = vmatpush2.xpose.msra.mxu0 0.0
    %667 = vmatprep.subr.mxu0 0.0
    %668 = vmatpush2.xpose.msra.mxu0 0.0
    %669 = vmatprep.subr.mxu0 0.0
    %670 = vmatpush2.xpose.msra.mxu0 0.0
    %671 = vmatprep.subr.mxu0 0.0
    %672 = vmatpush2.xpose.msra.mxu0 0.0
    %673 = vmatprep.subr.mxu0 0.0
    %674 = vmatpush2.xpose.msra.mxu0 0.0
    %675 = vmatprep.mubr.f32.mxu0 0.0
    %676 = vmatmul.mubr.f32.gmra.mxu0 %v609
    %v677 = vpop.f32.mrf.mxu0
    %v678 = vadd.f32 %v607, %v677
    %v679 = vpop.f32.mrf.mxu0
    %680 = vdwg.mxu0
    %681 = vst.msk [vmem:[#allocation2 + $0x5] sm:$0x1] %vm302, %v678
    %v682 = vld [vmem:[#allocation3 + $0x5] sm:$0x1]
    %v684 = vsel %vm136, %v678, 0
    %686 = vmatprep.subr.mxu0 0.0
    %687 = vmatpush1.xpose.msra.mxu0 0.0
    %688 = vmatprep.subr.mxu0 0.0
    %689 = vmatpush1.xpose.msra.mxu0 0.0
    %690 = vmatprep.subr.mxu0 0.0
    %691 = vmatpush1.xpose.msra.mxu0 0.0
    %692 = vmatprep.subr.mxu0 0.0
    %693 = vmatpush1.xpose.msra.mxu0 0.0
    %694 = vmatprep.subr.mxu0 0.0
    %695 = vmatpush1.xpose.msra.mxu0 0.0
    %696 = vmatprep.subr.mxu0 0.0
    %697 = vmatpush1.xpose.msra.mxu0 0.0
    %698 = vmatprep.subr.mxu0 0.0
    %699 = vmatpush1.xpose.msra.mxu0 0.0
    %700 = vmatprep.subr.mxu0 0.0
    %701 = vmatpush1.xpose.msra.mxu0 0.0
    %702 = vmatprep.subr.mxu0 0.0
    %703 = vmatpush1.xpose.msra.mxu0 0.0
    %704 = vmatprep.subr.mxu0 0.0
    %705 = vmatpush1.xpose.msra.mxu0 0.0
    %706 = vmatprep.subr.mxu0 0.0
    %707 = vmatpush1.xpose.msra.mxu0 0.0
    %708 = vmatprep.subr.mxu0 0.0
    %709 = vmatpush1.xpose.msra.mxu0 0.0
    %710 = vmatprep.subr.mxu0 0.0
    %711 = vmatpush1.xpose.msra.mxu0 0.0
    %712 = vmatprep.subr.mxu0 0.0
    %713 = vmatpush1.xpose.msra.mxu0 0.0
    %714 = vmatprep.subr.mxu0 0.0
    %715 = vmatpush1.xpose.msra.mxu0 0.0
    %716 = vmatprep.subr.mxu0 0.0
    %717 = vmatpush1.xpose.msra.mxu0 %v309
    %718 = vmatprep.subr.mxu0 0.0
    %719 = vmatpush2.xpose.msra.mxu0 0.0
    %720 = vmatprep.subr.mxu0 0.0
    %721 = vmatpush2.xpose.msra.mxu0 0.0
    %722 = vmatprep.subr.mxu0 0.0
    %723 = vmatpush2.xpose.msra.mxu0 0.0
    %724 = vmatprep.subr.mxu0 0.0
    %725 = vmatpush2.xpose.msra.mxu0 0.0
    %726 = vmatprep.subr.mxu0 0.0
    %727 = vmatpush2.xpose.msra.mxu0 0.0
    %728 = vmatprep.subr.mxu0 0.0
    %729 = vmatpush2.xpose.msra.mxu0 0.0
    %730 = vmatprep.subr.mxu0 0.0
    %731 = vmatpush2.xpose.msra.mxu0 0.0
    %732 = vmatprep.subr.mxu0 0.0
    %733 = vmatpush2.xpose.msra.mxu0 0.0
    %734 = vmatprep.subr.mxu0 0.0
    %735 = vmatpush2.xpose.msra.mxu0 0.0
    %736 = vmatprep.subr.mxu0 0.0
    %737 = vmatpush2.xpose.msra.mxu0 0.0
    %738 = vmatprep.subr.mxu0 0.0
    %739 = vmatpush2.xpose.msra.mxu0 0.0
    %740 = vmatprep.subr.mxu0 0.0
    %741 = vmatpush2.xpose.msra.mxu0 0.0
    %742 = vmatprep.subr.mxu0 0.0
    %743 = vmatpush2.xpose.msra.mxu0 0.0
    %744 = vmatprep.subr.mxu0 0.0
    %745 = vmatpush2.xpose.msra.mxu0 0.0
    %746 = vmatprep.subr.mxu0 0.0
    %747 = vmatpush2.xpose.msra.mxu0 0.0
    %748 = vmatprep.subr.mxu0 0.0
    %749 = vmatpush2.xpose.msra.mxu0 0.0
    %750 = vmatprep.mubr.f32.mxu0 0.0
    %751 = vmatmul.mubr.f32.gmra.mxu0 %v684
    %v752 = vpop.f32.mrf.mxu0
    %v753 = vadd.f32 %v682, %v752
    %v754 = vpop.f32.mrf.mxu0
    %755 = vdwg.mxu0
    %756 = vst.msk [vmem:[#allocation2 + $0x6] sm:$0x1] %vm302, %v753
    %v757 = vld [vmem:[#allocation3 + $0x6] sm:$0x1]
    %v759 = vsel %vm136, %v753, 0
    %761 = vmatprep.subr.mxu0 0.0
    %762 = vmatpush1.xpose.msra.mxu0 0.0
    %763 = vmatprep.subr.mxu0 0.0
    %764 = vmatpush1.xpose.msra.mxu0 0.0
    %765 = vmatprep.subr.mxu0 0.0
    %766 = vmatpush1.xpose.msra.mxu0 0.0
    %767 = vmatprep.subr.mxu0 0.0
    %768 = vmatpush1.xpose.msra.mxu0 0.0
    %769 = vmatprep.subr.mxu0 0.0
    %770 = vmatpush1.xpose.msra.mxu0 0.0
    %771 = vmatprep.subr.mxu0 0.0
    %772 = vmatpush1.xpose.msra.mxu0 0.0
    %773 = vmatprep.subr.mxu0 0.0
    %774 = vmatpush1.xpose.msra.mxu0 0.0
    %775 = vmatprep.subr.mxu0 0.0
    %776 = vmatpush1.xpose.msra.mxu0 0.0
    %777 = vmatprep.subr.mxu0 0.0
    %778 = vmatpush1.xpose.msra.mxu0 0.0
    %779 = vmatprep.subr.mxu0 0.0
    %780 = vmatpush1.xpose.msra.mxu0 0.0
    %781 = vmatprep.subr.mxu0 0.0
    %782 = vmatpush1.xpose.msra.mxu0 0.0
    %783 = vmatprep.subr.mxu0 0.0
    %784 = vmatpush1.xpose.msra.mxu0 0.0
    %785 = vmatprep.subr.mxu0 0.0
    %786 = vmatpush1.xpose.msra.mxu0 0.0
    %787 = vmatprep.subr.mxu0 0.0
    %788 = vmatpush1.xpose.msra.mxu0 0.0
    %789 = vmatprep.subr.mxu0 0.0
    %790 = vmatpush1.xpose.msra.mxu0 0.0
    %791 = vmatprep.subr.mxu0 0.0
    %792 = vmatpush1.xpose.msra.mxu0 %v309
    %793 = vmatprep.subr.mxu0 0.0
    %794 = vmatpush2.xpose.msra.mxu0 0.0
    %795 = vmatprep.subr.mxu0 0.0
    %796 = vmatpush2.xpose.msra.mxu0 0.0
    %797 = vmatprep.subr.mxu0 0.0
    %798 = vmatpush2.xpose.msra.mxu0 0.0
    %799 = vmatprep.subr.mxu0 0.0
    %800 = vmatpush2.xpose.msra.mxu0 0.0
    %801 = vmatprep.subr.mxu0 0.0
    %802 = vmatpush2.xpose.msra.mxu0 0.0
    %803 = vmatprep.subr.mxu0 0.0
    %804 = vmatpush2.xpose.msra.mxu0 0.0
    %805 = vmatprep.subr.mxu0 0.0
    %806 = vmatpush2.xpose.msra.mxu0 0.0
    %807 = vmatprep.subr.mxu0 0.0
    %808 = vmatpush2.xpose.msra.mxu0 0.0
    %809 = vmatprep.subr.mxu0 0.0
    %810 = vmatpush2.xpose.msra.mxu0 0.0
    %811 = vmatprep.subr.mxu0 0.0
    %812 = vmatpush2.xpose.msra.mxu0 0.0
    %813 = vmatprep.subr.mxu0 0.0
    %814 = vmatpush2.xpose.msra.mxu0 0.0
    %815 = vmatprep.subr.mxu0 0.0
    %816 = vmatpush2.xpose.msra.mxu0 0.0
    %817 = vmatprep.subr.mxu0 0.0
    %818 = vmatpush2.xpose.msra.mxu0 0.0
    %819 = vmatprep.subr.mxu0 0.0
    %820 = vmatpush2.xpose.msra.mxu0 0.0
    %821 = vmatprep.subr.mxu0 0.0
    %822 = vmatpush2.xpose.msra.mxu0 0.0
    %823 = vmatprep.subr.mxu0 0.0
    %824 = vmatpush2.xpose.msra.mxu0 0.0
    %825 = vmatprep.mubr.f32.mxu0 0.0
    %826 = vmatmul.mubr.f32.gmra.mxu0 %v759
    %v827 = vpop.f32.mrf.mxu0
    %v828 = vadd.f32 %v757, %v827
    %v829 = vpop.f32.mrf.mxu0
    %830 = vdwg.mxu0
    %831 = vst.msk [vmem:[#allocation2 + $0x7] sm:$0x1] %vm302, %v828
    %v832 = vld [vmem:[#allocation2] sm:$0xff]
    %v833 = vld [vmem:[%s7] sm:$0xff]
    %v835 = vsel %vm222, %v833, 0
    %v838 = vsel %vm222, %v218, 0
    %840 = vmatprep.subr.mxu0 0.0
    %841 = vmatpush1.xpose.msra.mxu0 0.0
    %842 = vmatprep.subr.mxu0 0.0
    %843 = vmatpush1.xpose.msra.mxu0 0.0
    %844 = vmatprep.subr.mxu0 0.0
    %845 = vmatpush1.xpose.msra.mxu0 0.0
    %846 = vmatprep.subr.mxu0 0.0
    %847 = vmatpush1.xpose.msra.mxu0 0.0
    %848 = vmatprep.subr.mxu0 0.0
    %849 = vmatpush1.xpose.msra.mxu0 0.0
    %850 = vmatprep.subr.mxu0 0.0
    %851 = vmatpush1.xpose.msra.mxu0 0.0
    %852 = vmatprep.subr.mxu0 0.0
    %853 = vmatpush1.xpose.msra.mxu0 0.0
    %854 = vmatprep.subr.mxu0 0.0
    %855 = vmatpush1.xpose.msra.mxu0 0.0
    %856 = vmatprep.subr.mxu0 0.0
    %857 = vmatpush1.xpose.msra.mxu0 0.0
    %858 = vmatprep.subr.mxu0 0.0
    %859 = vmatpush1.xpose.msra.mxu0 0.0
    %860 = vmatprep.subr.mxu0 0.0
    %861 = vmatpush1.xpose.msra.mxu0 0.0
    %862 = vmatprep.subr.mxu0 0.0
    %863 = vmatpush1.xpose.msra.mxu0 0.0
    %864 = vmatprep.subr.mxu0 0.0
    %865 = vmatpush1.xpose.msra.mxu0 0.0
    %866 = vmatprep.subr.mxu0 0.0
    %867 = vmatpush1.xpose.msra.mxu0 0.0
    %868 = vmatprep.subr.mxu0 0.0
    %869 = vmatpush1.xpose.msra.mxu0 0.0
    %870 = vmatprep.subr.mxu0 0.0
    %871 = vmatpush1.xpose.msra.mxu0 %v838
    %872 = vmatprep.subr.mxu0 0.0
    %873 = vmatpush2.xpose.msra.mxu0 0.0
    %874 = vmatprep.subr.mxu0 0.0
    %875 = vmatpush2.xpose.msra.mxu0 0.0
    %876 = vmatprep.subr.mxu0 0.0
    %877 = vmatpush2.xpose.msra.mxu0 0.0
    %878 = vmatprep.subr.mxu0 0.0
    %879 = vmatpush2.xpose.msra.mxu0 0.0
    %880 = vmatprep.subr.mxu0 0.0
    %881 = vmatpush2.xpose.msra.mxu0 0.0
    %882 = vmatprep.subr.mxu0 0.0
    %883 = vmatpush2.xpose.msra.mxu0 0.0
    %884 = vmatprep.subr.mxu0 0.0
    %885 = vmatpush2.xpose.msra.mxu0 0.0
    %886 = vmatprep.subr.mxu0 0.0
    %887 = vmatpush2.xpose.msra.mxu0 0.0
    %888 = vmatprep.subr.mxu0 0.0
    %889 = vmatpush2.xpose.msra.mxu0 0.0
    %890 = vmatprep.subr.mxu0 0.0
    %891 = vmatpush2.xpose.msra.mxu0 0.0
    %892 = vmatprep.subr.mxu0 0.0
    %893 = vmatpush2.xpose.msra.mxu0 0.0
    %894 = vmatprep.subr.mxu0 0.0
    %895 = vmatpush2.xpose.msra.mxu0 0.0
    %896 = vmatprep.subr.mxu0 0.0
    %897 = vmatpush2.xpose.msra.mxu0 0.0
    %898 = vmatprep.subr.mxu0 0.0
    %899 = vmatpush2.xpose.msra.mxu0 0.0
    %900 = vmatprep.subr.mxu0 0.0
    %901 = vmatpush2.xpose.msra.mxu0 0.0
    %902 = vmatprep.subr.mxu0 0.0
    %903 = vmatpush2.xpose.msra.mxu0 0.0
    %904 = vmatprep.mubr.f32.mxu0 0.0
    %905 = vmatmul.mubr.f32.gmra.mxu0 %v835
    %v906 = vpop.f32.mrf.mxu0
    %v907 = vadd.f32 0.0, %v906
    %v908 = vpop.f32.mrf.mxu0
    %909 = vdwg.mxu0
    %v911 = vsel %vm136, %v832, 0
    %v914 = vsel %vm136, %v217, 0
    %916 = vmatprep.subr.mxu0 0.0
    %917 = vmatpush1.xpose.msra.mxu0 0.0
    %918 = vmatprep.subr.mxu0 0.0
    %919 = vmatpush1.xpose.msra.mxu0 0.0
    %920 = vmatprep.subr.mxu0 0.0
    %921 = vmatpush1.xpose.msra.mxu0 0.0
    %922 = vmatprep.subr.mxu0 0.0
    %923 = vmatpush1.xpose.msra.mxu0 0.0
    %924 = vmatprep.subr.mxu0 0.0
    %925 = vmatpush1.xpose.msra.mxu0 0.0
    %926 = vmatprep.subr.mxu0 0.0
    %927 = vmatpush1.xpose.msra.mxu0 0.0
    %928 = vmatprep.subr.mxu0 0.0
    %929 = vmatpush1.xpose.msra.mxu0 0.0
    %930 = vmatprep.subr.mxu0 0.0
    %931 = vmatpush1.xpose.msra.mxu0 0.0
    %932 = vmatprep.subr.mxu0 0.0
    %933 = vmatpush1.xpose.msra.mxu0 0.0
    %934 = vmatprep.subr.mxu0 0.0
    %935 = vmatpush1.xpose.msra.mxu0 0.0
    %936 = vmatprep.subr.mxu0 0.0
    %937 = vmatpush1.xpose.msra.mxu0 0.0
    %938 = vmatprep.subr.mxu0 0.0
    %939 = vmatpush1.xpose.msra.mxu0 0.0
    %940 = vmatprep.subr.mxu0 0.0
    %941 = vmatpush1.xpose.msra.mxu0 0.0
    %942 = vmatprep.subr.mxu0 0.0
    %943 = vmatpush1.xpose.msra.mxu0 0.0
    %944 = vmatprep.subr.mxu0 0.0
    %945 = vmatpush1.xpose.msra.mxu0 0.0
    %946 = vmatprep.subr.mxu0 0.0
    %947 = vmatpush1.xpose.msra.mxu0 %v914
    %948 = vmatprep.subr.mxu0 0.0
    %949 = vmatpush2.xpose.msra.mxu0 0.0
    %950 = vmatprep.subr.mxu0 0.0
    %951 = vmatpush2.xpose.msra.mxu0 0.0
    %952 = vmatprep.subr.mxu0 0.0
    %953 = vmatpush2.xpose.msra.mxu0 0.0
    %954 = vmatprep.subr.mxu0 0.0
    %955 = vmatpush2.xpose.msra.mxu0 0.0
    %956 = vmatprep.subr.mxu0 0.0
    %957 = vmatpush2.xpose.msra.mxu0 0.0
    %958 = vmatprep.subr.mxu0 0.0
    %959 = vmatpush2.xpose.msra.mxu0 0.0
    %960 = vmatprep.subr.mxu0 0.0
    %961 = vmatpush2.xpose.msra.mxu0 0.0
    %962 = vmatprep.subr.mxu0 0.0
    %963 = vmatpush2.xpose.msra.mxu0 0.0
    %964 = vmatprep.subr.mxu0 0.0
    %965 = vmatpush2.xpose.msra.mxu0 0.0
    %966 = vmatprep.subr.mxu0 0.0
    %967 = vmatpush2.xpose.msra.mxu0 0.0
    %968 = vmatprep.subr.mxu0 0.0
    %969 = vmatpush2.xpose.msra.mxu0 0.0
    %970 = vmatprep.subr.mxu0 0.0
    %971 = vmatpush2.xpose.msra.mxu0 0.0
    %972 = vmatprep.subr.mxu0 0.0
    %973 = vmatpush2.xpose.msra.mxu0 0.0
    %974 = vmatprep.subr.mxu0 0.0
    %975 = vmatpush2.xpose.msra.mxu0 0.0
    %976 = vmatprep.subr.mxu0 0.0
    %977 = vmatpush2.xpose.msra.mxu0 0.0
    %978 = vmatprep.subr.mxu0 0.0
    %979 = vmatpush2.xpose.msra.mxu0 0.0
    %980 = vmatprep.mubr.f32.mxu0 0.0
    %981 = vmatmul.mubr.f32.gmra.mxu0 %v911
    %v982 = vpop.f32.mrf.mxu0
    %v983 = vadd.f32 %v907, %v982
    %v984 = vpop.f32.mrf.mxu0
    %985 = vdwg.mxu0
    %vm986 = vcmask 15360
    %987 = vst.msk [vmem:[%s10] sm:$0xff] %vm986, %v983
    %v988 = vld [vmem:[%s8] sm:$0xf]
    %vm989 = vcmask 1043456
    %v991 = vsel %vm989, %v988, 0
    %993 = vmatprep.subr.mxu0 0.0
    %994 = vmatpush1.msra.mxu0 0.0
    %995 = vmatprep.subr.mxu0 0.0
    %996 = vmatpush1.msra.mxu0 0.0
    %997 = vmatprep.subr.mxu0 0.0
    %998 = vmatpush1.msra.mxu0 0.0
    %999 = vmatprep.subr.mxu0 0.0
    %1000 = vmatpush1.msra.mxu0 0.0
    %1001 = vmatprep.subr.mxu0 0.0
    %1002 = vmatpush1.msra.mxu0 0.0
    %1003 = vmatprep.subr.mxu0 0.0
    %1004 = vmatpush1.msra.mxu0 0.0
    %1005 = vmatprep.subr.mxu0 0.0
    %1006 = vmatpush1.msra.mxu0 0.0
    %1007 = vmatprep.subr.mxu0 0.0
    %1008 = vmatpush1.msra.mxu0 0.0
    %1009 = vmatprep.subr.mxu0 0.0
    %1010 = vmatpush1.msra.mxu0 0.0
    %1011 = vmatprep.subr.mxu0 0.0
    %1012 = vmatpush1.msra.mxu0 0.0
    %1013 = vmatprep.subr.mxu0 0.0
    %1014 = vmatpush1.msra.mxu0 0.0
    %1015 = vmatprep.subr.mxu0 0.0
    %1016 = vmatpush1.msra.mxu0 0.0
    %1017 = vmatprep.subr.mxu0 0.0
    %1018 = vmatpush1.msra.mxu0 0.0
    %1019 = vmatprep.subr.mxu0 0.0
    %1020 = vmatpush1.msra.mxu0 0.0
    %1021 = vmatprep.subr.mxu0 0.0
    %1022 = vmatpush1.msra.mxu0 0.0
    %1023 = vmatprep.subr.mxu0 0.0
    %1024 = vmatpush1.msra.mxu0 %v991
    %1025 = vmatprep.subr.mxu0 0.0
    %1026 = vmatpush2.msra.mxu0 0.0
    %1027 = vmatprep.subr.mxu0 0.0
    %1028 = vmatpush2.msra.mxu0 0.0
    %1029 = vmatprep.subr.mxu0 0.0
    %1030 = vmatpush2.msra.mxu0 0.0
    %1031 = vmatprep.subr.mxu0 0.0
    %1032 = vmatpush2.msra.mxu0 0.0
    %1033 = vmatprep.subr.mxu0 0.0
    %1034 = vmatpush2.msra.mxu0 0.0
    %1035 = vmatprep.subr.mxu0 0.0
    %1036 = vmatpush2.msra.mxu0 0.0
    %1037 = vmatprep.subr.mxu0 0.0
    %1038 = vmatpush2.msra.mxu0 0.0
    %1039 = vmatprep.subr.mxu0 0.0
    %1040 = vmatpush2.msra.mxu0 0.0
    %1041 = vmatprep.subr.mxu0 0.0
    %1042 = vmatpush2.msra.mxu0 0.0
    %1043 = vmatprep.subr.mxu0 0.0
    %1044 = vmatpush2.msra.mxu0 0.0
    %1045 = vmatprep.subr.mxu0 0.0
    %1046 = vmatpush2.msra.mxu0 0.0
    %1047 = vmatprep.subr.mxu0 0.0
    %1048 = vmatpush2.msra.mxu0 0.0
    %1049 = vmatprep.subr.mxu0 0.0
    %1050 = vmatpush2.msra.mxu0 0.0
    %1051 = vmatprep.subr.mxu0 0.0
    %1052 = vmatpush2.msra.mxu0 0.0
    %1053 = vmatprep.subr.mxu0 0.0
    %1054 = vmatpush2.msra.mxu0 0.0
    %1055 = vmatprep.subr.mxu0 0.0
    %1056 = vmatpush2.msra.mxu0 0.0
    %1057 = vmatprep.mubr.f32.mxu0 0.0
    %1058 = vmatmul.mubr.f32.gmra.mxu0 %v914
    %v1059 = vpop.f32.mrf.mxu0
    %v1060 = vadd.f32 0.0, %v1059
    %v1061 = vpop.f32.mrf.mxu0
    %1062 = vdwg.mxu0
    %1063 = vmatprep.subr.mxu0 0.0
    %1064 = vmatpush1.xpose.msra.mxu0 0.0
    %1065 = vmatprep.subr.mxu0 0.0
    %1066 = vmatpush1.xpose.msra.mxu0 0.0
    %1067 = vmatprep.subr.mxu0 0.0
    %1068 = vmatpush1.xpose.msra.mxu0 0.0
    %1069 = vmatprep.subr.mxu0 0.0
    %1070 = vmatpush1.xpose.msra.mxu0 0.0
    %1071 = vmatprep.subr.mxu0 0.0
    %1072 = vmatpush1.xpose.msra.mxu0 0.0
    %1073 = vmatprep.subr.mxu0 0.0
    %1074 = vmatpush1.xpose.msra.mxu0 0.0
    %1075 = vmatprep.subr.mxu0 0.0
    %1076 = vmatpush1.xpose.msra.mxu0 0.0
    %1077 = vmatprep.subr.mxu0 0.0
    %1078 = vmatpush1.xpose.msra.mxu0 0.0
    %1079 = vmatprep.subr.mxu0 0.0
    %1080 = vmatpush1.xpose.msra.mxu0 0.0
    %1081 = vmatprep.subr.mxu0 0.0
    %1082 = vmatpush1.xpose.msra.mxu0 0.0
    %1083 = vmatprep.subr.mxu0 0.0
    %1084 = vmatpush1.xpose.msra.mxu0 0.0
    %1085 = vmatprep.subr.mxu0 0.0
    %1086 = vmatpush1.xpose.msra.mxu0 0.0
    %1087 = vmatprep.subr.mxu0 0.0
    %1088 = vmatpush1.xpose.msra.mxu0 0.0
    %1089 = vmatprep.subr.mxu0 0.0
    %1090 = vmatpush1.xpose.msra.mxu0 0.0
    %1091 = vmatprep.subr.mxu0 0.0
    %1092 = vmatpush1.xpose.msra.mxu0 0.0
    %1093 = vmatprep.subr.mxu0 0.0
    %1094 = vmatpush1.xpose.msra.mxu0 %v838
    %1095 = vmatprep.subr.mxu0 0.0
    %1096 = vmatpush2.xpose.msra.mxu0 0.0
    %1097 = vmatprep.subr.mxu0 0.0
    %1098 = vmatpush2.xpose.msra.mxu0 0.0
    %1099 = vmatprep.subr.mxu0 0.0
    %1100 = vmatpush2.xpose.msra.mxu0 0.0
    %1101 = vmatprep.subr.mxu0 0.0
    %1102 = vmatpush2.xpose.msra.mxu0 0.0
    %1103 = vmatprep.subr.mxu0 0.0
    %1104 = vmatpush2.xpose.msra.mxu0 0.0
    %1105 = vmatprep.subr.mxu0 0.0
    %1106 = vmatpush2.xpose.msra.mxu0 0.0
    %1107 = vmatprep.subr.mxu0 0.0
    %1108 = vmatpush2.xpose.msra.mxu0 0.0
    %1109 = vmatprep.subr.mxu0 0.0
    %1110 = vmatpush2.xpose.msra.mxu0 0.0
    %1111 = vmatprep.subr.mxu0 0.0
    %1112 = vmatpush2.xpose.msra.mxu0 0.0
    %1113 = vmatprep.subr.mxu0 0.0
    %1114 = vmatpush2.xpose.msra.mxu0 0.0
    %1115 = vmatprep.subr.mxu0 0.0
    %1116 = vmatpush2.xpose.msra.mxu0 0.0
    %1117 = vmatprep.subr.mxu0 0.0
    %1118 = vmatpush2.xpose.msra.mxu0 0.0
    %1119 = vmatprep.subr.mxu0 0.0
    %1120 = vmatpush2.xpose.msra.mxu0 0.0
    %1121 = vmatprep.subr.mxu0 0.0
    %1122 = vmatpush2.xpose.msra.mxu0 0.0
    %1123 = vmatprep.subr.mxu0 0.0
    %1124 = vmatpush2.xpose.msra.mxu0 0.0
    %1125 = vmatprep.subr.mxu0 0.0
    %1126 = vmatpush2.xpose.msra.mxu0 0.0
    %1127 = vmatprep.mubr.f32.mxu0 0.0
    %1128 = vmatmul.mubr.f32.gmra.mxu0 %v838
    %v1129 = vpop.f32.mrf.mxu0
    %v1130 = vadd.f32 0.0, %v1129
    %v1131 = vpop.f32.mrf.mxu0
    %1132 = vdwg.mxu0
    %v1134 = vsel %vm136, %v1060, 0
    %1136 = vmatprep.subr.mxu0 0.0
    %1137 = vmatpush1.xpose.msra.mxu0 0.0
    %1138 = vmatprep.subr.mxu0 0.0
    %1139 = vmatpush1.xpose.msra.mxu0 0.0
    %1140 = vmatprep.subr.mxu0 0.0
    %1141 = vmatpush1.xpose.msra.mxu0 0.0
    %1142 = vmatprep.subr.mxu0 0.0
    %1143 = vmatpush1.xpose.msra.mxu0 0.0
    %1144 = vmatprep.subr.mxu0 0.0
    %1145 = vmatpush1.xpose.msra.mxu0 0.0
    %1146 = vmatprep.subr.mxu0 0.0
    %1147 = vmatpush1.xpose.msra.mxu0 0.0
    %1148 = vmatprep.subr.mxu0 0.0
    %1149 = vmatpush1.xpose.msra.mxu0 0.0
    %1150 = vmatprep.subr.mxu0 0.0
    %1151 = vmatpush1.xpose.msra.mxu0 0.0
    %1152 = vmatprep.subr.mxu0 0.0
    %1153 = vmatpush1.xpose.msra.mxu0 0.0
    %1154 = vmatprep.subr.mxu0 0.0
    %1155 = vmatpush1.xpose.msra.mxu0 0.0
    %1156 = vmatprep.subr.mxu0 0.0
    %1157 = vmatpush1.xpose.msra.mxu0 0.0
    %1158 = vmatprep.subr.mxu0 0.0
    %1159 = vmatpush1.xpose.msra.mxu0 0.0
    %1160 = vmatprep.subr.mxu0 0.0
    %1161 = vmatpush1.xpose.msra.mxu0 0.0
    %1162 = vmatprep.subr.mxu0 0.0
    %1163 = vmatpush1.xpose.msra.mxu0 0.0
    %1164 = vmatprep.subr.mxu0 0.0
    %1165 = vmatpush1.xpose.msra.mxu0 0.0
    %1166 = vmatprep.subr.mxu0 0.0
    %1167 = vmatpush1.xpose.msra.mxu0 %v914
    %1168 = vmatprep.subr.mxu0 0.0
    %1169 = vmatpush2.xpose.msra.mxu0 0.0
    %1170 = vmatprep.subr.mxu0 0.0
    %1171 = vmatpush2.xpose.msra.mxu0 0.0
    %1172 = vmatprep.subr.mxu0 0.0
    %1173 = vmatpush2.xpose.msra.mxu0 0.0
    %1174 = vmatprep.subr.mxu0 0.0
    %1175 = vmatpush2.xpose.msra.mxu0 0.0
    %1176 = vmatprep.subr.mxu0 0.0
    %1177 = vmatpush2.xpose.msra.mxu0 0.0
    %1178 = vmatprep.subr.mxu0 0.0
    %1179 = vmatpush2.xpose.msra.mxu0 0.0
    %1180 = vmatprep.subr.mxu0 0.0
    %1181 = vmatpush2.xpose.msra.mxu0 0.0
    %1182 = vmatprep.subr.mxu0 0.0
    %1183 = vmatpush2.xpose.msra.mxu0 0.0
    %1184 = vmatprep.subr.mxu0 0.0
    %1185 = vmatpush2.xpose.msra.mxu0 0.0
    %1186 = vmatprep.subr.mxu0 0.0
    %1187 = vmatpush2.xpose.msra.mxu0 0.0
    %1188 = vmatprep.subr.mxu0 0.0
    %1189 = vmatpush2.xpose.msra.mxu0 0.0
    %1190 = vmatprep.subr.mxu0 0.0
    %1191 = vmatpush2.xpose.msra.mxu0 0.0
    %1192 = vmatprep.subr.mxu0 0.0
    %1193 = vmatpush2.xpose.msra.mxu0 0.0
    %1194 = vmatprep.subr.mxu0 0.0
    %1195 = vmatpush2.xpose.msra.mxu0 0.0
    %1196 = vmatprep.subr.mxu0 0.0
    %1197 = vmatpush2.xpose.msra.mxu0 0.0
    %1198 = vmatprep.subr.mxu0 0.0
    %1199 = vmatpush2.xpose.msra.mxu0 0.0
    %1200 = vmatprep.mubr.f32.mxu0 0.0
    %1201 = vmatmul.mubr.f32.gmra.mxu0 %v1134
    %v1202 = vpop.f32.mrf.mxu0
    %v1203 = vadd.f32 %v1130, %v1202
    %v1204 = vpop.f32.mrf.mxu0
    %1205 = vdwg.mxu0
    %vm1206 = vcmask 9216
    %1207 = vst.msk [vmem:[#allocation11] sm:$0x3] %vm1206, %v1203
    // Predicated region
    $region50: #{tpu_custom_call.1} parent=1 // pred_check
      _
    $region51: #{tpu_custom_call.1} parent=1 // pred_check_branch
      %1209 = sbr.rel (0) target = $region53
    $region52: #{tpu_custom_call.1} parent=1 // pred_region
      %s1211 = ssub.s32 64, 64
      %1212 = vsyncadd [#allocation6], %s1211
      %s1214 = sshll.u32 [#allocation10], 4
      %s1215 = int_to_ptr.vmem [resolvable:$true] %s1214
      %1217 = dma.vmem_to_hbm [thread:$0]  %s1215, 64, %s9, [#allocation6]
    $region53: #{tpu_custom_call.1} parent=1 // pred_fallthru
      _
    // Predicated region
    $region54: #{tpu_custom_call.1} parent=1 // pred_check
      _
    $region55: #{tpu_custom_call.1} parent=1 // pred_check_branch
      %1219 = sbr.rel (0) target = $region57
    $region56: #{tpu_custom_call.1} parent=1 // pred_region
      _
    $region57: #{tpu_custom_call.1} parent=1 // pred_fallthru
      _
    // Predicated region
    $region58: #{tpu_custom_call.1} parent=1 // pred_check
      _
    $region59: #{tpu_custom_call.1} parent=1 // pred_check_branch
      %1221 = sbr.rel (0) target = $region61
    $region60: #{tpu_custom_call.1} parent=1 // pred_region
      %s1223 = ssub.s32 32, 32
      %1224 = vsyncadd [#allocation12], %s1223
      %s1226 = sshll.u32 [#allocation11], 4
      %s1227 = int_to_ptr.vmem [resolvable:$true] %s1226
      %1229 = dma.vmem_to_hbm [thread:$0]  %s1227, 32, %s11, [#allocation12]
    $region61: #{tpu_custom_call.1} parent=1 // pred_fallthru
      _
    // Predicated region
    $region62: #{tpu_custom_call.1} parent=1 // pred_check
      _
    $region63: #{tpu_custom_call.1} parent=1 // pred_check_branch
      %1231 = sbr.rel (0) target = $region65
    $region64: #{tpu_custom_call.1} parent=1 // pred_region
      %1232 = dma.done [#allocation6], 64
    $region65: #{tpu_custom_call.1} parent=1 // pred_fallthru
      _
    // Predicated region
    $region66: #{tpu_custom_call.1} parent=1 // pred_check
      _
    $region67: #{tpu_custom_call.1} parent=1 // pred_check_branch
      %1234 = sbr.rel (0) target = $region69
    $region68: #{tpu_custom_call.1} parent=1 // pred_region
      _
    $region69: #{tpu_custom_call.1} parent=1 // pred_fallthru
      _
    // Predicated region
    $region70: #{tpu_custom_call.1} parent=1 // pred_check
      _
    $region71: #{tpu_custom_call.1} parent=1 // pred_check_branch
      %1236 = sbr.rel (0) target = $region73
    $region72: #{tpu_custom_call.1} parent=1 // pred_region
      %1237 = dma.done [#allocation12], 32
    $region73: #{tpu_custom_call.1} parent=1 // pred_fallthru
      _
    %1238 = vsyncpa [#allocation5], 1
    %1239 = vsyncpa [#allocation8], 1
    %1240 = vsyncpa [#allocation6], 1
    %1241 = vsyncpa [#allocation12], 1

</llo_original>
